<compile_context>
chip_gen: v7x
topology: tpu7x:2x2x1
jax: 0.10.0
libtpu: 0.0.40
codegen_flags: <defaults>
</compile_context>

<pallas_src>
import functools

import jax
import jax.numpy as jnp
from jax import lax
from jax.experimental import pallas as pl
from jax.experimental.pallas import tpu as pltpu


# ------------------------------ helpers ------------------------------------ #

def _round_up(x, m):
    return (x + m - 1) // m * m


def _tile_sizes():
    """Per-generation MXU-matched tile bases: 128-wide on v5e, 256 on v6e/v7x."""
    tm, tn, tk = 256, 256, 512
    try:
        name = str(getattr(pltpu.get_tpu_info(), "chip_version", "")).lower()
        if "v5" in name:
            tm, tn = 128, 128
    except Exception:
        pass
    return tm, tn, tk


def _pick_tm(m, base):
    """M tile rounded to the bf16 sublane pack; split in two when there is
    enough work so a v7x megacore gets a second parallel grid step."""
    tm = min(base, _round_up(m, 16))
    if m >= 32 and _round_up(m, tm) // tm < 2:
        tm = _round_up(-(-m // 2), 16)
    return tm


# ----------------------------- Pallas kernels ------------------------------- #

def _conv12_kernel(cols_ref, w1_ref, shift1_ref, w2_ref, shift2_ref, o_ref,
                   acc_ref):
    """conv1 (im2col matmul, K-accumulated) fused with the 1x1 conv2.

    acc += cols @ W1 (f32).  On the last K step:
      h1 = relu(acc + shift1); o = relu(h1 @ W2 + shift2)   (bf16 out).
    """
    @pl.when(pl.program_id(1) == 0)
    def _():
        acc_ref[...] = jnp.zeros_like(acc_ref)

    acc_ref[...] += jnp.dot(cols_ref[...], w1_ref[...],
                            preferred_element_type=jnp.float32)

    @pl.when(pl.program_id(1) == pl.num_programs(1) - 1)
    def _():
        h1 = jnp.maximum(acc_ref[...] + shift1_ref[...], 0.0)
        h2 = jnp.dot(h1.astype(jnp.bfloat16), w2_ref[...],
                     preferred_element_type=jnp.float32)
        h2 = jnp.maximum(h2 + shift2_ref[...], 0.0)
        o_ref[...] = h2.astype(o_ref.dtype)


def _matmul_shift_kernel(x_ref, w_ref, shift_ref, o_ref):
    """Single-K-block matmul: o = x @ w + shift (conv3 + flatten + fc)."""
    y = jnp.dot(x_ref[...], w_ref[...], preferred_element_type=jnp.float32)
    o_ref[...] = (y + shift_ref[...]).astype(o_ref.dtype)


# ------------------------------ kernel wrappers ------------------------------ #

def pallas_conv12(cols, w1, shift1, w2, shift2):
    """Fused conv1(+BN+ReLU) -> conv2(1x1 +BN+ReLU).

    cols: [M, K1] im2col patches (unpadded).  w1: [Kp1, C1p] (pre-padded bf16,
    BN scale folded), shift1: [1, C1p], w2: [C1p, 128], shift2: [1, 128].
    Returns [M, 128] bf16.
    """
    m, kin = cols.shape
    kp, c1p = w1.shape
    assert w2.shape == (c1p, 128), w2.shape

    tm_base, _, tk_base = _tile_sizes()
    tm = _pick_tm(m, tm_base)
    mp = _round_up(m, tm)
    tk = min(tk_base, kp)
    assert kp % tk == 0, (kp, tk)

    xb = cols.astype(jnp.bfloat16)
    if (mp, kp) != (m, kin):
        xb = jnp.pad(xb, ((0, mp - m), (0, kp - kin)))

    out = pl.pallas_call(
        _conv12_kernel,
        out_shape=jax.ShapeDtypeStruct((mp, 128), jnp.bfloat16),
        grid_spec=pltpu.PrefetchScalarGridSpec(
            num_scalar_prefetch=0,
            grid=(mp // tm, kp // tk),
            in_specs=[
                pl.BlockSpec((tm, tk), lambda i, k: (i, k)),
                pl.BlockSpec((tk, c1p), lambda i, k: (k, 0)),
                pl.BlockSpec((1, c1p), lambda i, k: (0, 0)),
                pl.BlockSpec((c1p, 128), lambda i, k: (0, 0)),
                pl.BlockSpec((1, 128), lambda i, k: (0, 0)),
            ],
            out_specs=pl.BlockSpec((tm, 128), lambda i, k: (i, 0)),
            scratch_shapes=[pltpu.VMEM((tm, c1p), jnp.float32)],
        ),
        compiler_params=pltpu.CompilerParams(
            dimension_semantics=("parallel", "arbitrary")),
    )(xb, w1, shift1, w2, shift2)
    return out[:m]


def pallas_matmul_shift(x, w, shift):
    """out = x @ w + shift with a single full-K block (K is a 128 multiple).

    x: [M, K] (unpadded rows), w: [K, Np] pre-padded bf16, shift: [1, Np] f32.
    Returns [M, Np] f32.
    """
    m, k = x.shape
    kw, npad = w.shape
    assert k == kw, (k, kw)
    assert k % 128 == 0, k

    tm_base, tn_base, _ = _tile_sizes()
    tm = min(tm_base, _round_up(m, 16))
    mp = _round_up(m, tm)
    tn = min(tn_base, npad)
    assert npad % tn == 0, (npad, tn)

    xb = x.astype(jnp.bfloat16)
    if mp != m:
        xb = jnp.pad(xb, ((0, mp - m), (0, 0)))

    out = pl.pallas_call(
        _matmul_shift_kernel,
        out_shape=jax.ShapeDtypeStruct((mp, npad), jnp.float32),
        grid_spec=pltpu.PrefetchScalarGridSpec(
            num_scalar_prefetch=0,
            grid=(mp // tm, npad // tn),
            in_specs=[
                pl.BlockSpec((tm, k), lambda i, j: (i, 0)),
                pl.BlockSpec((k, tn), lambda i, j: (0, j)),
                pl.BlockSpec((1, tn), lambda i, j: (0, j)),
            ],
            out_specs=pl.BlockSpec((tm, tn), lambda i, j: (i, j)),
        ),
        compiler_params=pltpu.CompilerParams(
            dimension_semantics=("parallel", "parallel")),
    )(xb, w, shift)
    return out[:m]


# ------------------------------- JAX glue ----------------------------------- #

def im2col(x_nhwc, kh, kw, stride):
    """Extract VALID conv patches. Returns ([N*Ho*Wo, kh*kw*C], (N, Ho, Wo))."""
    n, h, w, c = x_nhwc.shape
    ho = (h - kh) // stride + 1
    wo = (w - kw) // stride + 1
    patches = []
    for i in range(kh):
        for j in range(kw):
            patches.append(
                x_nhwc[:, i:i + stride * ho:stride, j:j + stride * wo:stride, :])
    cols = jnp.concatenate(patches, axis=-1)          # [N, Ho, Wo, kh*kw*C]
    return cols.reshape(n * ho * wo, kh * kw * c), (n, ho, wo)


def torch_weight_to_cols(w_oihw):
    """[Cout, Cin, kh, kw] -> [kh*kw*Cin, Cout]  (matches im2col column order)."""
    cout, cin, kh, kw = w_oihw.shape
    return jnp.transpose(w_oihw, (2, 3, 1, 0)).reshape(kh * kw * cin, cout)


def bn_fold(gamma, beta, mean, var, eps=1e-5):
    scale = gamma / jnp.sqrt(var + eps)
    shift = beta - mean * scale
    return scale.reshape(1, -1), shift.reshape(1, -1)


def prepare_params(params, eps=1e-5):
    """One-time weight preprocessing: BN-scale folding, conv3+fc algebraic
    fusion, bf16 casts AND padding to tile multiples (hoisted out of forward)."""
    _, tn_base, tk_base = _tile_sizes()
    prep = {}

    # conv1: BasicConv2d(in_c, in_c, k=5, s=3).
    s1, b1 = bn_fold(*params["conv1_bn"], eps=eps)
    w1 = torch_weight_to_cols(params["conv1_w"]) * s1          # [K1, C]
    k1, c = w1.shape
    c1p = _round_up(c, 128)
    tk1 = min(tk_base, _round_up(k1, 128))
    kp1 = _round_up(k1, tk1)
    prep["w1"] = jnp.pad(w1, ((0, kp1 - k1), (0, c1p - c))).astype(jnp.bfloat16)
    prep["shift1"] = jnp.pad(b1, ((0, 0), (0, c1p - c))).astype(jnp.float32)

    # conv2: BasicConv2d(in_c, 128, k=1) -- 1x1 conv == matmul weight [C, 128].
    s2, b2 = bn_fold(*params["conv2_bn"], eps=eps)
    w2 = jnp.transpose(params["conv2_w"][:, :, 0, 0], (1, 0)) * s2
    prep["w2"] = jnp.pad(w2, ((0, c1p - c), (0, 0))).astype(jnp.bfloat16)
    prep["shift2"] = b2.astype(jnp.float32)                    # [1, 128]

    # conv3 (k=5, bias, no BN/ReLU) + flatten + fc fused:
    #   (cols @ W3 + b3) @ fc_w.T + fc_b == cols @ (W3 @ fc_w.T) + (b3 @ fc_w.T + fc_b)
    w3 = torch_weight_to_cols(params["conv3_w"])               # [25*128, 1024]
    wf = params["fc_w"].T                                      # [1024, ncls]
    w3fc = w3 @ wf                                             # f32
    ncls = w3fc.shape[1]
    tn3 = min(tn_base, _round_up(ncls, 128))
    nclsp = _round_up(ncls, tn3)
    prep["w3fc"] = jnp.pad(w3fc, ((0, 0), (0, nclsp - ncls))).astype(jnp.bfloat16)
    shift3 = (params["conv3_b"] @ wf + params["fc_b"]).reshape(1, -1)
    prep["shift3fc"] = jnp.pad(
        shift3, ((0, 0), (0, nclsp - ncls))).astype(jnp.float32)
    return prep


def inception_aux_forward(x_nchw, prep, *, num_classes):
    """Forward pass of InceptionAux (inference semantics for BN)."""
    x = jnp.transpose(x_nchw, (0, 2, 3, 1)).astype(jnp.bfloat16)   # NCHW -> NHWC

    # conv1 (5x5, s=3, BN, ReLU) fused with conv2 (1x1, BN, ReLU): one kernel.
    cols, (n, ho, wo) = im2col(x, 5, 5, 3)
    h2 = pallas_conv12(cols, prep["w1"], prep["shift1"],
                       prep["w2"], prep["shift2"])                 # [n*ho*wo, 128]

    # conv3 (k=5, bias) + flatten + fc: with 5x5 input the im2col is a reshape.
    assert (ho, wo) == (5, 5), (ho, wo)   # spatial 17x17 input required by the module
    x3 = h2.reshape(n, ho * wo * 128)                              # [n, 3200]
    out = pallas_matmul_shift(x3, prep["w3fc"], prep["shift3fc"])  # [n, nclsp] f32
    return out[:, :num_classes]


# ---------------------------- pure-JAX reference ----------------------------- #

def _ref_forward(x_nchw, params):
    def conv(x, w, stride):
        return lax.conv_general_dilated(
            x, w, (stride, stride), "VALID",
            dimension_numbers=("NCHW", "OIHW", "NCHW"))

    def bn(x, p, eps=1e-5):
        g, b, m, v = (t.reshape(1, -1, 1, 1) for t in p)
        return (x - m) / jnp.sqrt(v + eps) * g + b

    x = jax.nn.relu(bn(conv(x_nchw, params["conv1_w"], 3), params["conv1_bn"]))
    x = jax.nn.relu(bn(conv(x, params["conv2_w"], 1), params["conv2_bn"]))
    x = conv(x, params["conv3_w"], 1) + params["conv3_b"].reshape(1, -1, 1, 1)
    x = x.reshape(x.shape[0], -1)
    return x @ params["fc_w"].T + params["fc_b"]


# ----------------------------------- main ------------------------------------ #

if __name__ == "__main__":
    # Small but shape-consistent with InceptionAux: spatial must be 17 so that
    # conv1(k5,s3) -> 5x5, conv3(k5) -> 1x1, flatten -> 1024 features for fc.
    N, C, H, W = 2, 8, 17, 17
    NUM_CLASSES = 16

    key = jax.random.PRNGKey(0)
    ks = jax.random.split(key, 12)

    def rnd(k, shape, s=0.1):
        return jax.random.normal(k, shape, jnp.float32) * s

    params = {
        "conv1_w": rnd(ks[0], (C, C, 5, 5)),
        "conv1_bn": (1.0 + rnd(ks[1], (C,)), rnd(ks[2], (C,)),
                     rnd(ks[3], (C,)), 1.0 + jnp.abs(rnd(ks[4], (C,)))),
        "conv2_w": rnd(ks[5], (128, C, 1, 1)),
        "conv2_bn": (1.0 + rnd(ks[6], (128,)), rnd(ks[7], (128,)),
                     rnd(ks[8], (128,)), 1.0 + jnp.abs(rnd(ks[9], (128,)))),
        "conv3_w": rnd(ks[10], (1024, 128, 5, 5), s=0.02),
        "conv3_b": rnd(ks[11], (1024,)),
        "fc_w": rnd(jax.random.fold_in(key, 100), (NUM_CLASSES, 1024), s=0.02),
        "fc_b": rnd(jax.random.fold_in(key, 101), (NUM_CLASSES,)),
    }

    x = jax.random.normal(jax.random.fold_in(key, 200), (N, C, H, W), jnp.float32)

    prep = prepare_params(params)                      # one-time weight prep
    fwd = jax.jit(inception_aux_forward, static_argnames="num_classes")

    out = jax.block_until_ready(fwd(x, prep, num_classes=NUM_CLASSES))
    ref = jax.block_until_ready(_ref_forward(x, params))

    assert out.shape == (N, NUM_CLASSES), out.shape
    # bf16 MXU operands + folded conv3/fc accumulation order => bf16-level tolerance.
    assert jnp.allclose(out, ref, atol=5e-2, rtol=5e-2), (
        float(jnp.max(jnp.abs(out - ref))))

    print("KERNEL_OK")
</pallas_src>

<mosaic_0001>
module attributes {stable_mosaic.version = 11 : i64} {
  func.func @_conv12_kernel(%arg0: i32, %arg1: i32, %arg2: memref<32x256xbf16, #tpu.memory_space<vmem>>, %arg3: memref<256x128xbf16, #tpu.memory_space<vmem>>, %arg4: memref<1x128xf32, #tpu.memory_space<vmem>>, %arg5: memref<128x128xbf16, #tpu.memory_space<vmem>>, %arg6: memref<1x128xf32, #tpu.memory_space<vmem>>, %arg7: memref<32x128xbf16, #tpu.memory_space<vmem>>, %arg8: memref<32x128xf32, #tpu.memory_space<vmem>>) attributes {dimension_semantics = [#tpu.dimension_semantics<parallel>, #tpu.dimension_semantics<arbitrary>], iteration_bounds = array<i64: 2, 1>, scalar_prefetch = 0 : i64, scratch_operands = 1 : i64, tpu.core_type = #tpu.core_type<tc>, window_params = [{transform_indices = @transform_0, window_bounds = array<i64: 32, 256>}, {transform_indices = @transform_1, window_bounds = array<i64: 256, 128>}, {pipeline_mode = #tpu.pipeline_mode<synchronous>, transform_indices = @transform_2, window_bounds = array<i64: 1, 128>}, {pipeline_mode = #tpu.pipeline_mode<synchronous>, transform_indices = @transform_3, window_bounds = array<i64: 128, 128>}, {pipeline_mode = #tpu.pipeline_mode<synchronous>, transform_indices = @transform_4, window_bounds = array<i64: 1, 128>}, {transform_indices = @transform_5, window_bounds = array<i64: 32, 128>}]} {
    %c0_i32 = arith.constant 0 : i32
    %0 = arith.cmpi eq, %arg1, %c0_i32 : i32
    %1 = arith.extui %0 : i1 to i32
    %c0_i32_0 = arith.constant 0 : i32
    %2 = arith.cmpi ne, %1, %c0_i32_0 : i32
    scf.if %2 {
      %cst_10 = arith.constant 0.000000e+00 : f32
      %12 = vector.broadcast %cst_10 : f32 to vector<32x128xf32>
      %c0_11 = arith.constant 0 : index
      %c0_12 = arith.constant 0 : index
      %13 = vector.load %arg8[%c0_11, %c0_12] : memref<32x128xf32, #tpu.memory_space<vmem>>, vector<32x128xf32>
      tpu.vector_store %arg8[%c0_11, %c0_12], %12 {strides = array<i32>} : memref<32x128xf32, #tpu.memory_space<vmem>>, vector<32x128xf32>,
    } else {
    }
    %c0 = arith.constant 0 : index
    %c0_1 = arith.constant 0 : index
    %3 = vector.load %arg8[%c0, %c0_1] : memref<32x128xf32, #tpu.memory_space<vmem>>, vector<32x128xf32>
    %c0_2 = arith.constant 0 : index
    %c0_3 = arith.constant 0 : index
    %4 = vector.load %arg2[%c0_2, %c0_3] : memref<32x256xbf16, #tpu.memory_space<vmem>>, vector<32x256xbf16>
    %c0_4 = arith.constant 0 : index
    %c0_5 = arith.constant 0 : index
    %5 = vector.load %arg3[%c0_4, %c0_5] : memref<256x128xbf16, #tpu.memory_space<vmem>>, vector<256x128xbf16>
    %cst = arith.constant dense<0.000000e+00> : vector<32x128xf32>
    %6 = tpu.matmul %4, %5, %cst {dimension_numbers = #tpu.dot_dimension_numbers<[1], [0], [0], [1], [0, 0, 1, 1], [], []>} : vector<32x256xbf16>, vector<256x128xbf16>, vector<32x128xf32> -> vector<32x128xf32>
    %7 = arith.addf %3, %6 : vector<32x128xf32>
    %c0_6 = arith.constant 0 : index
    %c0_7 = arith.constant 0 : index
    %8 = vector.load %arg8[%c0_6, %c0_7] : memref<32x128xf32, #tpu.memory_space<vmem>>, vector<32x128xf32>
    tpu.vector_store %arg8[%c0_6, %c0_7], %7 {strides = array<i32>} : memref<32x128xf32, #tpu.memory_space<vmem>>, vector<32x128xf32>,
    %c0_i32_8 = arith.constant 0 : i32
    %9 = arith.cmpi eq, %arg1, %c0_i32_8 : i32
    %10 = arith.extui %9 : i1 to i32
    %c0_i32_9 = arith.constant 0 : i32
    %11 = arith.cmpi ne, %10, %c0_i32_9 : i32
    scf.if %11 {
      %c0_10 = arith.constant 0 : index
      %c0_11 = arith.constant 0 : index
      %12 = vector.load %arg8[%c0_10, %c0_11] : memref<32x128xf32, #tpu.memory_space<vmem>>, vector<32x128xf32>
      %c0_12 = arith.constant 0 : index
      %c0_13 = arith.constant 0 : index
      %13 = vector.load %arg4[%c0_12, %c0_13] : memref<1x128xf32, #tpu.memory_space<vmem>>, vector<1x128xf32>
      %14 = vector.broadcast %13 : vector<1x128xf32> to vector<32x128xf32>
      %15 = arith.addf %12, %14 : vector<32x128xf32>
      %cst_14 = arith.constant 0.000000e+00 : f32
      %16 = vector.broadcast %cst_14 : f32 to vector<32x128xf32>
      %17 = arith.maximumf %15, %16 : vector<32x128xf32>
      %18 = arith.truncf %17 : vector<32x128xf32> to vector<32x128xbf16>
      %c0_15 = arith.constant 0 : index
      %c0_16 = arith.constant 0 : index
      %19 = vector.load %arg5[%c0_15, %c0_16] : memref<128x128xbf16, #tpu.memory_space<vmem>>, vector<128x128xbf16>
      %cst_17 = arith.constant dense<0.000000e+00> : vector<32x128xf32>
      %20 = tpu.matmul %18, %19, %cst_17 {dimension_numbers = #tpu.dot_dimension_numbers<[1], [0], [0], [1], [0, 0, 1, 1], [], []>} : vector<32x128xbf16>, vector<128x128xbf16>, vector<32x128xf32> -> vector<32x128xf32>
      %c0_18 = arith.constant 0 : index
      %c0_19 = arith.constant 0 : index
      %21 = vector.load %arg6[%c0_18, %c0_19] : memref<1x128xf32, #tpu.memory_space<vmem>>, vector<1x128xf32>
      %22 = vector.broadcast %21 : vector<1x128xf32> to vector<32x128xf32>
      %23 = arith.addf %20, %22 : vector<32x128xf32>
      %cst_20 = arith.constant 0.000000e+00 : f32
      %24 = vector.broadcast %cst_20 : f32 to vector<32x128xf32>
      %25 = arith.maximumf %23, %24 : vector<32x128xf32>
      %26 = arith.truncf %25 : vector<32x128xf32> to vector<32x128xbf16>
      %c0_21 = arith.constant 0 : index
      %c0_22 = arith.constant 0 : index
      %27 = vector.load %arg7[%c0_21, %c0_22] : memref<32x128xbf16, #tpu.memory_space<vmem>>, vector<32x128xbf16>
      tpu.vector_store %arg7[%c0_21, %c0_22], %26 {strides = array<i32>} : memref<32x128xbf16, #tpu.memory_space<vmem>>, vector<32x128xbf16>,
    } else {
    }
    return
  }
  func.func @transform_0(%arg0: i32, %arg1: i32) -> (i32, i32) {
    %c0_i32 = arith.constant 0 : i32
    return %arg0, %arg1 : i32, i32
  }
  func.func @transform_1(%arg0: i32, %arg1: i32) -> (i32, i32) {
    %c0_i32 = arith.constant 0 : i32
    %c0_i32_0 = arith.constant 0 : i32
    return %arg1, %c0_i32 : i32, i32
  }
  func.func @transform_2(%arg0: i32, %arg1: i32) -> (i32, i32) {
    %c0_i32 = arith.constant 0 : i32
    %c0_i32_0 = arith.constant 0 : i32
    %c0_i32_1 = arith.constant 0 : i32
    return %c0_i32, %c0_i32_0 : i32, i32
  }
  func.func @transform_3(%arg0: i32, %arg1: i32) -> (i32, i32) {
    %c0_i32 = arith.constant 0 : i32
    %c0_i32_0 = arith.constant 0 : i32
    %c0_i32_1 = arith.constant 0 : i32
    return %c0_i32, %c0_i32_0 : i32, i32
  }
  func.func @transform_4(%arg0: i32, %arg1: i32) -> (i32, i32) {
    %c0_i32 = arith.constant 0 : i32
    %c0_i32_0 = arith.constant 0 : i32
    %c0_i32_1 = arith.constant 0 : i32
    return %c0_i32, %c0_i32_0 : i32, i32
  }
  func.func @transform_5(%arg0: i32, %arg1: i32) -> (i32, i32) {
    %c0_i32 = arith.constant 0 : i32
    %c0_i32_0 = arith.constant 0 : i32
    return %arg0, %c0_i32 : i32, i32
  }
}

module attributes {stable_mosaic.version = 11 : i64} {
  func.func @_matmul_shift_kernel(%arg0: i32, %arg1: i32, %arg2: memref<16x3200xbf16, #tpu.memory_space<vmem>>, %arg3: memref<3200x128xbf16, #tpu.memory_space<vmem>>, %arg4: memref<1x128xf32, #tpu.memory_space<vmem>>, %arg5: memref<16x128xf32, #tpu.memory_space<vmem>>) attributes {dimension_semantics = [#tpu.dimension_semantics<parallel>, #tpu.dimension_semantics<parallel>], iteration_bounds = array<i64: 1, 1>, scalar_prefetch = 0 : i64, scratch_operands = 0 : i64, tpu.core_type = #tpu.core_type<tc>, window_params = [{transform_indices = @transform_0, window_bounds = array<i64: 16, 3200>}, {transform_indices = @transform_1, window_bounds = array<i64: 3200, 128>}, {transform_indices = @transform_2, window_bounds = array<i64: 1, 128>}, {transform_indices = @transform_3, window_bounds = array<i64: 16, 128>}]} {
    %c0 = arith.constant 0 : index
    %c0_0 = arith.constant 0 : index
    %0 = vector.load %arg2[%c0, %c0_0] : memref<16x3200xbf16, #tpu.memory_space<vmem>>, vector<16x3200xbf16>
    %c0_1 = arith.constant 0 : index
    %c0_2 = arith.constant 0 : index
    %1 = vector.load %arg3[%c0_1, %c0_2] : memref<3200x128xbf16, #tpu.memory_space<vmem>>, vector<3200x128xbf16>
    %cst = arith.constant dense<0.000000e+00> : vector<16x128xf32>
    %2 = tpu.matmul %0, %1, %cst {dimension_numbers = #tpu.dot_dimension_numbers<[1], [0], [0], [1], [0, 0, 1, 1], [], []>} : vector<16x3200xbf16>, vector<3200x128xbf16>, vector<16x128xf32> -> vector<16x128xf32>
    %c0_3 = arith.constant 0 : index
    %c0_4 = arith.constant 0 : index
    %3 = vector.load %arg4[%c0_3, %c0_4] : memref<1x128xf32, #tpu.memory_space<vmem>>, vector<1x128xf32>
    %4 = vector.broadcast %3 : vector<1x128xf32> to vector<16x128xf32>
    %5 = arith.addf %2, %4 : vector<16x128xf32>
    %c0_5 = arith.constant 0 : index
    %c0_6 = arith.constant 0 : index
    %6 = vector.load %arg5[%c0_5, %c0_6] : memref<16x128xf32, #tpu.memory_space<vmem>>, vector<16x128xf32>
    tpu.vector_store %arg5[%c0_5, %c0_6], %5 {strides = array<i32>} : memref<16x128xf32, #tpu.memory_space<vmem>>, vector<16x128xf32>,
    return
  }
  func.func @transform_0(%arg0: i32, %arg1: i32) -> (i32, i32) {
    %c0_i32 = arith.constant 0 : i32
    %c0_i32_0 = arith.constant 0 : i32
    return %arg0, %c0_i32 : i32, i32
  }
  func.func @transform_1(%arg0: i32, %arg1: i32) -> (i32, i32) {
    %c0_i32 = arith.constant 0 : i32
    %c0_i32_0 = arith.constant 0 : i32
    return %c0_i32, %arg1 : i32, i32
  }
  func.func @transform_2(%arg0: i32, %arg1: i32) -> (i32, i32) {
    %c0_i32 = arith.constant 0 : i32
    %c0_i32_0 = arith.constant 0 : i32
    return %c0_i32, %arg1 : i32, i32
  }
  func.func @transform_3(%arg0: i32, %arg1: i32) -> (i32, i32) {
    %c0_i32 = arith.constant 0 : i32
    return %arg0, %arg1 : i32, i32
  }
}

</mosaic_0001>

<llo_original>
// kernel: inception_aux_forward.2
$region0: #{inception_aux_forward.2}
  #allocation0 [shape = 'u32[]', space=smem, size = 0x4, offset = 0x4, fixed_abs, tag = 'smem constant byte address 0x4 - core index']
  #allocation1 [shape = 'u32[144,128]{1,0:T(1,128)}', space=vmem, size = 0x12000, scoped, tag = 'internal scratch']
  #allocation2 [shape = 'f32[32,128]{1,0:T(8,128)}', space=vmem, size = 0x4000, scoped, tag = 'scratch operand']
  %s0 = inlined_call_operand.vmem [shape: bf16[64,256], index: 0, kind: input, shape index: {}]
  %s1 = inlined_call_operand.vmem [shape: bf16[256,128], index: 1, kind: input, shape index: {}]
  %s2 = inlined_call_operand.vmem [shape: f32[1,128], index: 2, kind: input, shape index: {}]
  %s3 = inlined_call_operand.vmem [shape: bf16[128,128], index: 3, kind: input, shape index: {}]
  %s4 = inlined_call_operand.vmem [shape: f32[1,128], index: 4, kind: input, shape index: {}]
  %s5 = inlined_call_operand.vmem [shape: bf16[64,128], index: 5, kind: output, shape index: {}]
  %s6 = sld [smem:[#allocation0]]
  $region61: #{inception_aux_forward.2} parent=0
    _
  %s8 = ssub.s32 1, %s6
  %s9 = scalar_select 0, %s8, %s6
  loop: start=0, step=1, limit=4
  $region2: #{inception_aux_forward.2} parent=0 // loop_pre_header
    _
  $region3: #{inception_aux_forward.2} parent=0 // loop_header
    %s11 = sphi 0, %s15
    %p12 = scmp.ge.s32.totalorder %s11, 4
    %s18 = sphi 0, %s30
    %s19 = sphi 0, %s26
    %s20 = sphi 0, %s18
    %s21 = sphi 0, %s19
    %s22 = sphi 0, %s20
    %s23 = sphi 0, %s21
    %s35 = sphi 0, %s37
    %s38 = sphi 0, %s35
    %s39 = sphi 0, %s38
    %s55 = sphi 0, %s39
    %s61 = sphi 0, %s63
    %s64 = sphi 0, %s61
    %s65 = sphi 0, %s64
    %s81 = sphi 0, %s65
    %s85 = sphi 0, %s85
    %s87 = sphi 0, %s85
    %s88 = sphi 0, %s87
    %s102 = sphi 0, %s88
    %s106 = sphi 0, %s106
    %s108 = sphi 0, %s106
    %s109 = sphi 0, %s108
    %s123 = sphi 0, %s109
    %s127 = sphi 0, %s127
    %s129 = sphi 0, %s127
    %s130 = sphi 0, %s129
    %s144 = sphi 0, %s130
    %s150 = sphi 0, %s152
    %s153 = sphi 0, %s150
    %s154 = sphi 0, %s153
    %s170 = sphi 0, %s154
  $region4: #{inception_aux_forward.2} parent=0 // loop_header_branch
    %14 = sbr.rel (%p12) target = $region8
  $region5: #{inception_aux_forward.2} parent=0 // loop_body
    %s16 = ssub.s32 %s11, 1
    %s17 = ssub.s32 %s11, 2
    %s24 = sadd.s32 1, %s19
    %p25 = scmp.ge.s32.totalorder %s24, 1
    %s26 = scalar_select %p25, 0, %s24
    %s27 = sadd.s32 1, %s18
    %s28 = scalar_select %p25, %s27, %s18
    %p29 = scmp.ge.s32.totalorder %s28, 2
    %s30 = scalar_select %p29, 0, %s28
    %s31 = ssub.s32 %s18, %s30
    %s32 = ssub.s32 %s19, %s26
    %s33 = sor.u32 %s31, %s32
    %p34 = scmp.eq.s32.totalorder %s33, 0
    %s36 = sadd.s32 %s35, 1
    %s37 = scalar_select %p34, %s35, %s36
    %p40 = pneg %p34
    %p41 = scmp.eq.s32.totalorder %s11, 1
    %p42 = por %p40, %p41
    %p43 = scmp.ne.s32.totalorder %s35, %s38
    %p44 = scmp.eq.s32.totalorder %s11, 0
    %p45 = por %p43, %p44
    %p46 = scmp.ne.s32.totalorder %s35, %s38
    %p47 = scmp.eq.s32.totalorder %s16, 1
    %p48 = por %p46, %p47
    %p49 = scmp.ne.s32.totalorder %s38, %s39
    %p50 = scmp.eq.s32.totalorder %s16, 0
    %p51 = por %p49, %p50
    %p52 = scmp.ne.s32.totalorder %s38, %s39
    %p53 = scmp.eq.s32.totalorder %s17, 1
    %p54 = por %p52, %p53
    %p56 = scmp.ne.s32.totalorder %s39, %s55
    %p57 = scmp.eq.s32.totalorder %s17, 0
    %p58 = por %p56, %p57
    %s59 = ssub.s32 %s19, %s26
    %p60 = scmp.eq.s32.totalorder %s59, 0
    %s62 = sadd.s32 %s61, 1
    %s63 = scalar_select %p60, %s61, %s62
    %p66 = pneg %p60
    %p67 = scmp.eq.s32.totalorder %s11, 1
    %p68 = por %p66, %p67
    %p69 = scmp.ne.s32.totalorder %s61, %s64
    %p70 = scmp.eq.s32.totalorder %s11, 0
    %p71 = por %p69, %p70
    %p72 = scmp.ne.s32.totalorder %s61, %s64
    %p73 = scmp.eq.s32.totalorder %s16, 1
    %p74 = por %p72, %p73
    %p75 = scmp.ne.s32.totalorder %s64, %s65
    %p76 = scmp.eq.s32.totalorder %s16, 0
    %p77 = por %p75, %p76
    %p78 = scmp.ne.s32.totalorder %s64, %s65
    %p79 = scmp.eq.s32.totalorder %s17, 1
    %p80 = por %p78, %p79
    %p82 = scmp.ne.s32.totalorder %s65, %s81
    %p83 = scmp.eq.s32.totalorder %s17, 0
    %p84 = por %p82, %p83
    %s86 = sadd.s32 %s85, 1
    %p89 = scmp.eq.s32.totalorder %s11, 1
    %p90 = scmp.ne.s32.totalorder %s85, %s87
    %p91 = scmp.eq.s32.totalorder %s11, 0
    %p92 = por %p90, %p91
    %p93 = scmp.ne.s32.totalorder %s85, %s87
    %p94 = scmp.eq.s32.totalorder %s16, 1
    %p95 = por %p93, %p94
    %p96 = scmp.ne.s32.totalorder %s87, %s88
    %p97 = scmp.eq.s32.totalorder %s16, 0
    %p98 = por %p96, %p97
    %p99 = scmp.ne.s32.totalorder %s87, %s88
    %p100 = scmp.eq.s32.totalorder %s17, 1
    %p101 = por %p99, %p100
    %p103 = scmp.ne.s32.totalorder %s88, %s102
    %p104 = scmp.eq.s32.totalorder %s17, 0
    %p105 = por %p103, %p104
    %s107 = sadd.s32 %s106, 1
    %p110 = scmp.eq.s32.totalorder %s11, 1
    %p111 = scmp.ne.s32.totalorder %s106, %s108
    %p112 = scmp.eq.s32.totalorder %s11, 0
    %p113 = por %p111, %p112
    %p114 = scmp.ne.s32.totalorder %s106, %s108
    %p115 = scmp.eq.s32.totalorder %s16, 1
    %p116 = por %p114, %p115
    %p117 = scmp.ne.s32.totalorder %s108, %s109
    %p118 = scmp.eq.s32.totalorder %s16, 0
    %p119 = por %p117, %p118
    %p120 = scmp.ne.s32.totalorder %s108, %s109
    %p121 = scmp.eq.s32.totalorder %s17, 1
    %p122 = por %p120, %p121
    %p124 = scmp.ne.s32.totalorder %s109, %s123
    %p125 = scmp.eq.s32.totalorder %s17, 0
    %p126 = por %p124, %p125
    %s128 = sadd.s32 %s127, 1
    %p131 = scmp.eq.s32.totalorder %s11, 1
    %p132 = scmp.ne.s32.totalorder %s127, %s129
    %p133 = scmp.eq.s32.totalorder %s11, 0
    %p134 = por %p132, %p133
    %p135 = scmp.ne.s32.totalorder %s127, %s129
    %p136 = scmp.eq.s32.totalorder %s16, 1
    %p137 = por %p135, %p136
    %p138 = scmp.ne.s32.totalorder %s129, %s130
    %p139 = scmp.eq.s32.totalorder %s16, 0
    %p140 = por %p138, %p139
    %p141 = scmp.ne.s32.totalorder %s129, %s130
    %p142 = scmp.eq.s32.totalorder %s17, 1
    %p143 = por %p141, %p142
    %p145 = scmp.ne.s32.totalorder %s130, %s144
    %p146 = scmp.eq.s32.totalorder %s17, 0
    %p147 = por %p145, %p146
    %s148 = ssub.s32 %s18, %s30
    %p149 = scmp.eq.s32.totalorder %s148, 0
    %s151 = sadd.s32 %s150, 1
    %s152 = scalar_select %p149, %s150, %s151
    %p155 = pneg %p149
    %p156 = scmp.eq.s32.totalorder %s11, 1
    %p157 = por %p155, %p156
    %p158 = scmp.ne.s32.totalorder %s150, %s153
    %p159 = scmp.eq.s32.totalorder %s11, 0
    %p160 = por %p158, %p159
    %p161 = scmp.ne.s32.totalorder %s150, %s153
    %p162 = scmp.eq.s32.totalorder %s16, 1
    %p163 = por %p161, %p162
    %p164 = scmp.ne.s32.totalorder %s153, %s154
    %p165 = scmp.eq.s32.totalorder %s16, 0
    %p166 = por %p164, %p165
    %p167 = scmp.ne.s32.totalorder %s153, %s154
    %p168 = scmp.eq.s32.totalorder %s17, 1
    %p169 = por %p167, %p168
    %p171 = scmp.ne.s32.totalorder %s154, %s170
    %p172 = scmp.eq.s32.totalorder %s17, 0
    %p173 = por %p171, %p172
    %p174 = scmp.le.s32.totalorder 1, %s11
    %p175 = scmp.lt.s32.totalorder %s11, 3
    %p176 = pnand %p174, %p175
    %p177 = pneg %p176
    // Predicated region
    $region9: #{inception_aux_forward.2} parent=5 // pred_check
      _
    $region10: #{inception_aux_forward.2} parent=5 // pred_check_branch
      %179 = sbr.rel (%p176) target = $region12
    $region11: #{inception_aux_forward.2} parent=5 // pred_region
      %s180 = ssub.s32 %s11, 1
      // Predicated region
      $region13: #{inception_aux_forward.2} parent=11 // pred_check
        %p181 = pneg %p77
      $region14: #{inception_aux_forward.2} parent=11 // pred_check_branch
        %183 = sbr.rel (%p181) target = $region16
      $region15: #{inception_aux_forward.2} parent=11 // pred_region
        %s184 = smul.u32 32, %s21
        %p185 = scmp.lt.s32.totalorder %s184, 31
        %s186 = scalar_select %p185, %s184, 31
        %s187 = smul.addr %s186, 4
        %s188 = scalar_lea.vmem %s1, %s187
        %s189 = smul.u32 32, %s21
      $region16: #{inception_aux_forward.2} parent=11 // pred_fallthru
        _
      // Predicated region
      $region17: #{inception_aux_forward.2} parent=11 // pred_check
        %p190 = pneg %p98
      $region18: #{inception_aux_forward.2} parent=11 // pred_check_branch
        %192 = sbr.rel (%p190) target = $region20
      $region19: #{inception_aux_forward.2} parent=11 // pred_region
        _
      $region20: #{inception_aux_forward.2} parent=11 // pred_fallthru
        _
      // Predicated region
      $region21: #{inception_aux_forward.2} parent=11 // pred_check
        %p193 = pneg %p119
      $region22: #{inception_aux_forward.2} parent=11 // pred_check_branch
        %195 = sbr.rel (%p193) target = $region24
      $region23: #{inception_aux_forward.2} parent=11 // pred_region
        _
      $region24: #{inception_aux_forward.2} parent=11 // pred_fallthru
        _
      // Predicated region
      $region25: #{inception_aux_forward.2} parent=11 // pred_check
        %p196 = pneg %p140
      $region26: #{inception_aux_forward.2} parent=11 // pred_check_branch
        %198 = sbr.rel (%p196) target = $region28
      $region27: #{inception_aux_forward.2} parent=11 // pred_region
        _
      $region28: #{inception_aux_forward.2} parent=11 // pred_fallthru
        _
    $region12: #{inception_aux_forward.2} parent=5 // pred_fallthru
      _
    %p199 = scmp.lt.s32.totalorder %s11, 2
    // Predicated region
    $region29: #{inception_aux_forward.2} parent=5 // pred_check
      %p200 = pneg %p199
    $region30: #{inception_aux_forward.2} parent=5 // pred_check_branch
      %202 = sbr.rel (%p200) target = $region32
    $region31: #{inception_aux_forward.2} parent=5 // pred_region
      // Predicated region
      $region33: #{inception_aux_forward.2} parent=31 // pred_check
        %p203 = pneg %p45
      $region34: #{inception_aux_forward.2} parent=31 // pred_check_branch
        %205 = sbr.rel (%p203) target = $region36
      $region35: #{inception_aux_forward.2} parent=31 // pred_region
        %s206 = smul.u32 4, %s18
        %s207 = smul.u32 2, %s19
        %p208 = scmp.lt.s32.totalorder %s206, 7
        %s209 = scalar_select %p208, %s206, 7
        %p210 = scmp.lt.s32.totalorder %s207, 1
        %s211 = scalar_select %p210, %s207, 1
        %s212 = smul.addr %s209, 2
        %s213 = sadd.s32 %s211, %s212
        %s214 = smul.addr %s213, 4
        %s215 = scalar_lea.vmem %s0, %s214
        %s216 = smul.u32 4, %s18
        %s217 = smul.u32 2, %s19
      $region36: #{inception_aux_forward.2} parent=31 // pred_fallthru
        _
    $region32: #{inception_aux_forward.2} parent=5 // pred_fallthru
      _
    %p218 = scmp.le.s32.totalorder 1, %s11
    %p219 = scmp.lt.s32.totalorder %s11, 3
    %p220 = pnand %p218, %p219
    %p221 = pneg %p220
    // Predicated region
    $region37: #{inception_aux_forward.2} parent=5 // pred_check
      _
    $region38: #{inception_aux_forward.2} parent=5 // pred_check_branch
      %223 = sbr.rel (%p220) target = $region40
    $region39: #{inception_aux_forward.2} parent=5 // pred_region
      %s224 = ssub.s32 %s11, 1
      %s225 = smul.u32 4, %s20
      %s226 = smul.u32 2, %s21
      %p227 = scmp.lt.s32.totalorder %s225, 7
      %s228 = scalar_select %p227, %s225, 7
      %p229 = scmp.lt.s32.totalorder %s226, 1
      %s230 = scalar_select %p229, %s226, 1
      %s231 = smul.addr %s228, 2
      %s232 = sadd.s32 %s230, %s231
      %s233 = smul.addr %s232, 4
      %s234 = scalar_lea.vmem %s0, %s233
      %p235 = pneg %p51
      %p236 = pneg %p48
      %s237 = smul.u32 32, %s21
      %p238 = scmp.lt.s32.totalorder %s237, 31
      %s239 = scalar_select %p238, %s237, 31
      %s240 = smul.addr %s239, 4
      %s241 = scalar_lea.vmem %s1, %s240
      %p242 = pneg %p77
      %p243 = pneg %p74
      %p244 = pneg %p98
      %p245 = pneg %p95
      %p246 = pneg %p119
      %p247 = pneg %p116
      %p248 = pneg %p140
      %p249 = pneg %p137
      %p250 = pneg %p166
      %p251 = pneg %p163
      %s252 = smul.u32 4, %s20
      %p253 = scmp.lt.s32.totalorder %s252, 7
      %s254 = scalar_select %p253, %s252, 7
      %s255 = smul.addr %s254, 4
      %s256 = scalar_lea.vmem %s5, %s255
      %s257 = smul.u32 4, %s20
      %s258 = smul.u32 2, %s21
      %p259 = scmp.lt.s32.totalorder %s257, 7
      %s260 = scalar_select %p259, %s257, 7
      %p261 = scmp.lt.s32.totalorder %s258, 1
      %s262 = scalar_select %p261, %s258, 1
      %s263 = smul.addr %s260, 2
      %s264 = sadd.s32 %s262, %s263
      %s265 = smul.addr %s264, 4
      %s266 = scalar_lea.vmem %s0, %s265
      %s267 = smul.u32 4, %s20
      %s268 = smul.u32 2, %s21
      %s269 = smul.u32 32, %s21
      %p270 = scmp.lt.s32.totalorder %s269, 31
      %s271 = scalar_select %p270, %s269, 31
      %s272 = smul.addr %s271, 4
      %s273 = scalar_lea.vmem %s1, %s272
      %s274 = smul.u32 32, %s21
      %s275 = smul.u32 4, %s20
      %p276 = scmp.lt.s32.totalorder %s275, 7
      %s277 = scalar_select %p276, %s275, 7
      %s278 = smul.addr %s277, 4
      %s279 = scalar_lea.vmem %s5, %s278
      %s280 = smul.u32 4, %s20
      %p282 = scmp.eq.s32.totalorder %s21, 0
      // Predicated region
      $region41: #{inception_aux_forward.2} parent=39 // pred_check
        %p283 = pneg %p282
      $region42: #{inception_aux_forward.2} parent=39 // pred_check_branch
        %285 = sbr.rel (%p283) target = $region44
      $region43: #{inception_aux_forward.2} parent=39 // pred_region
        %286 = vst [vmem:[#allocation2] sm:$0xff] 0.0
        %287 = vst [vmem:[#allocation2 + $0x8] sm:$0xff] 0.0
        %288 = vst [vmem:[#allocation2 + $0x10] sm:$0xff] 0.0
        %289 = vst [vmem:[#allocation2 + $0x18] sm:$0xff] 0.0
      $region44: #{inception_aux_forward.2} parent=39 // pred_fallthru
        _
      %v290 = vld [vmem:[#allocation2] sm:$0xff]
      %v291 = vld [vmem:[#allocation2 + $0x8] sm:$0xff]
      %v292 = vld [vmem:[#allocation2 + $0x10] sm:$0xff]
      %v293 = vld [vmem:[#allocation2 + $0x18] sm:$0xff]
      %v294 = vld [vmem:[%s266] sm:$0xff]
      %v295 = vld [vmem:[%s266 + $0x8] sm:$0xff]
      %v296 = vld [vmem:[%s266 + $0x10] sm:$0xff]
      %v297 = vld [vmem:[%s266 + $0x18] sm:$0xff]
      %v298 = vld [vmem:[%s273] sm:$0xf]
      %v299 = vld [vmem:[%s273 + $0x4] sm:$0xf]
      %v300 = vld [vmem:[%s273 + $0x8] sm:$0xf]
      %v301 = vld [vmem:[%s273 + $0xc] sm:$0xf]
      %v302 = vld [vmem:[%s273 + $0x10] sm:$0xf]
      %v303 = vld [vmem:[%s273 + $0x14] sm:$0xf]
      %v304 = vld [vmem:[%s273 + $0x18] sm:$0xf]
      %v305 = vld [vmem:[%s273 + $0x1c] sm:$0xf]
      %v306 = vld [vmem:[%s273 + $0x20] sm:$0xf]
      %v307 = vld [vmem:[%s273 + $0x24] sm:$0xf]
      %v308 = vld [vmem:[%s273 + $0x28] sm:$0xf]
      %v309 = vld [vmem:[%s273 + $0x2c] sm:$0xf]
      %v310 = vld [vmem:[%s273 + $0x30] sm:$0xf]
      %v311 = vld [vmem:[%s273 + $0x34] sm:$0xf]
      %v312 = vld [vmem:[%s273 + $0x38] sm:$0xf]
      %v313 = vld [vmem:[%s273 + $0x3c] sm:$0xf]
      %v314 = vld [vmem:[%s273 + $0x40] sm:$0xf]
      %v315 = vld [vmem:[%s273 + $0x44] sm:$0xf]
      %v316 = vld [vmem:[%s273 + $0x48] sm:$0xf]
      %v317 = vld [vmem:[%s273 + $0x4c] sm:$0xf]
      %v318 = vld [vmem:[%s273 + $0x50] sm:$0xf]
      %v319 = vld [vmem:[%s273 + $0x54] sm:$0xf]
      %v320 = vld [vmem:[%s273 + $0x58] sm:$0xf]
      %v321 = vld [vmem:[%s273 + $0x5c] sm:$0xf]
      %v322 = vld [vmem:[%s273 + $0x60] sm:$0xf]
      %v323 = vld [vmem:[%s273 + $0x64] sm:$0xf]
      %v324 = vld [vmem:[%s273 + $0x68] sm:$0xf]
      %v325 = vld [vmem:[%s273 + $0x6c] sm:$0xf]
      %v326 = vld [vmem:[%s273 + $0x70] sm:$0xf]
      %v327 = vld [vmem:[%s273 + $0x74] sm:$0xf]
      %v328 = vld [vmem:[%s273 + $0x78] sm:$0xf]
      %v329 = vld [vmem:[%s273 + $0x7c] sm:$0xf]
      %v334 = vunpack.c.l.b16 %v294
      %v335 = vunpack.c.h.b16 %v294
      %v336 = vunpack.c.l.b16 %v295
      %v337 = vunpack.c.h.b16 %v295
      %v338 = vunpack.c.l.b16 %v296
      %v339 = vunpack.c.h.b16 %v296
      %v340 = vunpack.c.l.b16 %v297
      %v341 = vunpack.c.h.b16 %v297
      %v342 = vpack.c.b16 %v336, %v334
      %v343 = vpack.c.b16 %v337, %v335
      %v344 = vpack.c.b16 %v340, %v338
      %v345 = vpack.c.b16 %v341, %v339
      %v382 = vunpack.c.l.b16 %v298
      %v383 = vunpack.c.l.b16 %v299
      %v384 = vunpack.c.l.b16 %v300
      %v385 = vunpack.c.l.b16 %v301
      %v386 = vunpack.c.l.b16 %v302
      %v387 = vunpack.c.l.b16 %v303
      %v388 = vunpack.c.l.b16 %v304
      %v389 = vunpack.c.l.b16 %v305
      %v390 = vunpack.c.l.b16 %v306
      %v391 = vunpack.c.l.b16 %v307
      %v392 = vunpack.c.l.b16 %v308
      %v393 = vunpack.c.l.b16 %v309
      %v394 = vunpack.c.l.b16 %v310
      %v395 = vunpack.c.l.b16 %v311
      %v396 = vunpack.c.l.b16 %v312
      %v397 = vunpack.c.l.b16 %v313
      %v398 = vunpack.c.l.b16 %v314
      %v399 = vunpack.c.l.b16 %v315
      %v400 = vunpack.c.l.b16 %v316
      %v401 = vunpack.c.l.b16 %v317
      %v402 = vunpack.c.l.b16 %v318
      %v403 = vunpack.c.l.b16 %v319
      %v404 = vunpack.c.l.b16 %v320
      %v405 = vunpack.c.l.b16 %v321
      %v406 = vunpack.c.l.b16 %v322
      %v407 = vunpack.c.l.b16 %v323
      %v408 = vunpack.c.l.b16 %v324
      %v409 = vunpack.c.l.b16 %v325
      %v410 = vunpack.c.l.b16 %v326
      %v411 = vunpack.c.l.b16 %v327
      %v412 = vunpack.c.l.b16 %v328
      %v413 = vunpack.c.l.b16 %v329
      %v414 = vpack.c.b16 %v383, %v382
      %v415 = vpack.c.b16 %v385, %v384
      %v416 = vpack.c.b16 %v387, %v386
      %v417 = vpack.c.b16 %v389, %v388
      %v418 = vpack.c.b16 %v391, %v390
      %v419 = vpack.c.b16 %v393, %v392
      %v420 = vpack.c.b16 %v395, %v394
      %v421 = vpack.c.b16 %v397, %v396
      %v422 = vpack.c.b16 %v399, %v398
      %v423 = vpack.c.b16 %v401, %v400
      %v424 = vpack.c.b16 %v403, %v402
      %v425 = vpack.c.b16 %v405, %v404
      %v426 = vpack.c.b16 %v407, %v406
      %v427 = vpack.c.b16 %v409, %v408
      %v428 = vpack.c.b16 %v411, %v410
      %v429 = vpack.c.b16 %v413, %v412
      %446 = vmatprep.subr.bf16.mxu0 0
      %447 = vmatpush1.bf16.msra.mxu0 %v414
      %448 = vmatprep.subr.bf16.mxu0 0
      %449 = vmatpush1.bf16.msra.mxu0 %v415
      %450 = vmatprep.subr.bf16.mxu0 0
      %451 = vmatpush1.bf16.msra.mxu0 %v416
      %452 = vmatprep.subr.bf16.mxu0 0
      %453 = vmatpush1.bf16.msra.mxu0 %v417
      %454 = vmatprep.subr.bf16.mxu0 0
      %455 = vmatpush1.bf16.msra.mxu0 %v418
      %456 = vmatprep.subr.bf16.mxu0 0
      %457 = vmatpush1.bf16.msra.mxu0 %v419
      %458 = vmatprep.subr.bf16.mxu0 0
      %459 = vmatpush1.bf16.msra.mxu0 %v420
      %460 = vmatprep.subr.bf16.mxu0 0
      %461 = vmatpush1.bf16.msra.mxu0 %v421
      %462 = vmatprep.subr.bf16.mxu0 0
      %463 = vmatpush1.bf16.msra.mxu0 %v422
      %464 = vmatprep.subr.bf16.mxu0 0
      %465 = vmatpush1.bf16.msra.mxu0 %v423
      %466 = vmatprep.subr.bf16.mxu0 0
      %467 = vmatpush1.bf16.msra.mxu0 %v424
      %468 = vmatprep.subr.bf16.mxu0 0
      %469 = vmatpush1.bf16.msra.mxu0 %v425
      %470 = vmatprep.subr.bf16.mxu0 0
      %471 = vmatpush1.bf16.msra.mxu0 %v426
      %472 = vmatprep.subr.bf16.mxu0 0
      %473 = vmatpush1.bf16.msra.mxu0 %v427
      %474 = vmatprep.subr.bf16.mxu0 0
      %475 = vmatpush1.bf16.msra.mxu0 %v428
      %476 = vmatprep.subr.bf16.mxu0 0
      %477 = vmatpush1.bf16.msra.mxu0 %v429
      %478 = vmatprep.mubr.bf16.mxu0 %v343
      %479 = vmatmul.mubr.bf16.gmra.mrb[0].mxu0 %v342
      %v480 = vpop.f32.mrb[0].mxu0
      %v481 = vadd.f32 0.0, %v480
      %v482 = vpop.f32.mrb[0].mxu0
      %v483 = vpop.f32.mrb[0].mxu0
      %v484 = vadd.f32 0.0, %v483
      %v485 = vpop.f32.mrb[0].mxu0
      %486 = vmatprep.mubr.bf16.mxu0 %v345
      %487 = vmatmul.mubr.bf16.gmra.mrb[0].mxu0 %v344
      %v488 = vpop.f32.mrb[0].mxu0
      %v489 = vadd.f32 0.0, %v488
      %v490 = vpop.f32.mrb[0].mxu0
      %v491 = vpop.f32.mrb[0].mxu0
      %v492 = vadd.f32 0.0, %v491
      %v493 = vpop.f32.mrb[0].mxu0
      %494 = vdwg.mxu0
      %v495 = vadd.f32 %v290, %v481
      %v496 = vadd.f32 %v291, %v484
      %v497 = vadd.f32 %v292, %v489
      %v498 = vadd.f32 %v293, %v492
      %499 = vst [vmem:[#allocation2] sm:$0xff] %v495
      %500 = vst [vmem:[#allocation2 + $0x8] sm:$0xff] %v496
      %501 = vst [vmem:[#allocation2 + $0x10] sm:$0xff] %v497
      %502 = vst [vmem:[#allocation2 + $0x18] sm:$0xff] %v498
      // Predicated region
      $region45: #{inception_aux_forward.2} parent=39 // pred_check
        %p503 = pneg %p282
      $region46: #{inception_aux_forward.2} parent=39 // pred_check_branch
        %505 = sbr.rel (%p503) target = $region48
      $region47: #{inception_aux_forward.2} parent=39 // pred_region
        %v506 = vld [vmem:[#allocation2] sm:$0xff]
        %v507 = vld [vmem:[#allocation2 + $0x8] sm:$0xff]
        %v508 = vld [vmem:[#allocation2 + $0x10] sm:$0xff]
        %v509 = vld [vmem:[#allocation2 + $0x18] sm:$0xff]
        %v510 = vld [vmem:[%s2] sm:$0x1]
        %v512 = vlaneseq
        %v513 = vshrl.u32 %v512, 7
        %v514 = vsub.s32 0, %v513
        %v515 = vrot.slane %v510, %v514
        %v517 = vadd.f32 %v506, %v515
        %v518 = vadd.f32 %v507, %v515
        %v519 = vadd.f32 %v508, %v515
        %v520 = vadd.f32 %v509, %v515
        %v521 = vmax.f32 %v517, 0.0
        %v522 = vmax.f32 %v518, 0.0
        %v523 = vmax.f32 %v519, 0.0
        %v524 = vmax.f32 %v520, 0.0
        %v525 = vpack.c.bf16 %v522, %v521
        %v526 = vpack.c.bf16 %v524, %v523
        %v527 = vld [vmem:[%s3] sm:$0xf]
        %v528 = vld [vmem:[%s3 + $0x4] sm:$0xf]
        %v529 = vld [vmem:[%s3 + $0x8] sm:$0xf]
        %v530 = vld [vmem:[%s3 + $0xc] sm:$0xf]
        %v531 = vld [vmem:[%s3 + $0x10] sm:$0xf]
        %v532 = vld [vmem:[%s3 + $0x14] sm:$0xf]
        %v533 = vld [vmem:[%s3 + $0x18] sm:$0xf]
        %v534 = vld [vmem:[%s3 + $0x1c] sm:$0xf]
        %v535 = vld [vmem:[%s3 + $0x20] sm:$0xf]
        %v536 = vld [vmem:[%s3 + $0x24] sm:$0xf]
        %v537 = vld [vmem:[%s3 + $0x28] sm:$0xf]
        %v538 = vld [vmem:[%s3 + $0x2c] sm:$0xf]
        %v539 = vld [vmem:[%s3 + $0x30] sm:$0xf]
        %v540 = vld [vmem:[%s3 + $0x34] sm:$0xf]
        %v541 = vld [vmem:[%s3 + $0x38] sm:$0xf]
        %v542 = vld [vmem:[%s3 + $0x3c] sm:$0xf]
        %v543 = vld [vmem:[%s4] sm:$0x1]
        %v545 = vlaneseq
        %v546 = vshrl.u32 %v545, 7
        %v547 = vsub.s32 0, %v546
        %v548 = vrot.slane %v543, %v547
        %v566 = vunpack.c.l.b16 %v527
        %v567 = vunpack.c.l.b16 %v528
        %v568 = vunpack.c.l.b16 %v529
        %v569 = vunpack.c.l.b16 %v530
        %v570 = vunpack.c.l.b16 %v531
        %v571 = vunpack.c.l.b16 %v532
        %v572 = vunpack.c.l.b16 %v533
        %v573 = vunpack.c.l.b16 %v534
        %v574 = vunpack.c.l.b16 %v535
        %v575 = vunpack.c.l.b16 %v536
        %v576 = vunpack.c.l.b16 %v537
        %v577 = vunpack.c.l.b16 %v538
        %v578 = vunpack.c.l.b16 %v539
        %v579 = vunpack.c.l.b16 %v540
        %v580 = vunpack.c.l.b16 %v541
        %v581 = vunpack.c.l.b16 %v542
        %v582 = vpack.c.b16 %v567, %v566
        %v583 = vpack.c.b16 %v569, %v568
        %v584 = vpack.c.b16 %v571, %v570
        %v585 = vpack.c.b16 %v573, %v572
        %v586 = vpack.c.b16 %v575, %v574
        %v587 = vpack.c.b16 %v577, %v576
        %v588 = vpack.c.b16 %v579, %v578
        %v589 = vpack.c.b16 %v581, %v580
        %598 = vmatprep.subr.bf16.mxu0 0
        %599 = vmatpush1.bf16.msra.mxu0 %v582
        %600 = vmatprep.subr.bf16.mxu0 0
        %601 = vmatpush1.bf16.msra.mxu0 %v583
        %602 = vmatprep.subr.bf16.mxu0 0
        %603 = vmatpush1.bf16.msra.mxu0 %v584
        %604 = vmatprep.subr.bf16.mxu0 0
        %605 = vmatpush1.bf16.msra.mxu0 %v585
        %606 = vmatprep.subr.bf16.mxu0 0
        %607 = vmatpush1.bf16.msra.mxu0 %v586
        %608 = vmatprep.subr.bf16.mxu0 0
        %609 = vmatpush1.bf16.msra.mxu0 %v587
        %610 = vmatprep.subr.bf16.mxu0 0
        %611 = vmatpush1.bf16.msra.mxu0 %v588
        %612 = vmatprep.subr.bf16.mxu0 0
        %613 = vmatpush1.bf16.msra.mxu0 %v589
        %614 = vmatprep.subr.bf16.mxu0 0
        %615 = vmatpush1.bf16.msra.mxu0 0
        %616 = vmatprep.subr.bf16.mxu0 0
        %617 = vmatpush1.bf16.msra.mxu0 0
        %618 = vmatprep.subr.bf16.mxu0 0
        %619 = vmatpush1.bf16.msra.mxu0 0
        %620 = vmatprep.subr.bf16.mxu0 0
        %621 = vmatpush1.bf16.msra.mxu0 0
        %622 = vmatprep.subr.bf16.mxu0 0
        %623 = vmatpush1.bf16.msra.mxu0 0
        %624 = vmatprep.subr.bf16.mxu0 0
        %625 = vmatpush1.bf16.msra.mxu0 0
        %626 = vmatprep.subr.bf16.mxu0 0
        %627 = vmatpush1.bf16.msra.mxu0 0
        %628 = vmatprep.subr.bf16.mxu0 0
        %629 = vmatpush1.bf16.msra.mxu0 0
        %630 = vmatprep.mubr.bf16.mxu0 0
        %631 = vmatmul.mubr.bf16.gmra.mrb[0].mxu0 %v525
        %v632 = vpop.f32.mrb[0].mxu0
        %v633 = vadd.f32 %v548, %v632
        %v634 = vpop.f32.mrb[0].mxu0
        %v635 = vpop.f32.mrb[0].mxu0
        %v636 = vadd.f32 %v548, %v635
        %v637 = vpop.f32.mrb[0].mxu0
        %638 = vmatprep.mubr.bf16.mxu0 0
        %639 = vmatmul.mubr.bf16.gmra.mrb[0].mxu0 %v526
        %v640 = vpop.f32.mrb[0].mxu0
        %v641 = vadd.f32 %v548, %v640
        %v642 = vpop.f32.mrb[0].mxu0
        %v643 = vpop.f32.mrb[0].mxu0
        %v644 = vadd.f32 %v548, %v643
        %v645 = vpop.f32.mrb[0].mxu0
        %646 = vdwg.mxu0
        %v647 = vmax.f32 %v633, 0.0
        %v648 = vmax.f32 %v636, 0.0
        %v649 = vmax.f32 %v641, 0.0
        %v650 = vmax.f32 %v644, 0.0
        %v651 = vpack.c.bf16 %v648, %v647
        %v652 = vpack.c.bf16 %v650, %v649
        %v655 = vunpack.c.l.b16 %v651
        %v656 = vunpack.c.h.b16 %v651
        %v657 = vunpack.c.l.b16 %v652
        %v658 = vunpack.c.h.b16 %v652
        %v659 = vpack.c.b16 %v655, %v655
        %v660 = vpack.c.b16 %v656, %v656
        %v661 = vpack.c.b16 %v657, %v657
        %v662 = vpack.c.b16 %v658, %v658
        %667 = vst [vmem:[%s279] sm:$0xf] %v659
        %668 = vst [vmem:[%s279 + $0x4] sm:$0xf] %v660
        %669 = vst [vmem:[%s279 + $0x8] sm:$0xf] %v661
        %670 = vst [vmem:[%s279 + $0xc] sm:$0xf] %v662
      $region48: #{inception_aux_forward.2} parent=39 // pred_fallthru
        _
      %s671 = smul.u32 4, %s20
      %p672 = scmp.lt.s32.totalorder %s671, 7
      %s673 = scalar_select %p672, %s671, 7
      %s674 = smul.addr %s673, 4
      %s675 = scalar_lea.vmem %s5, %s674
      // Predicated region
      $region49: #{inception_aux_forward.2} parent=39 // pred_check
        %p676 = pneg %p163
      $region50: #{inception_aux_forward.2} parent=39 // pred_check_branch
        %678 = sbr.rel (%p676) target = $region52
      $region51: #{inception_aux_forward.2} parent=39 // pred_region
        %s679 = smul.u32 4, %s20
      $region52: #{inception_aux_forward.2} parent=39 // pred_fallthru
        _
    $region40: #{inception_aux_forward.2} parent=5 // pred_fallthru
      _
    %p680 = scmp.le.s32.totalorder 2, %s11
    // Predicated region
    $region53: #{inception_aux_forward.2} parent=5 // pred_check
      %p681 = pneg %p680
    $region54: #{inception_aux_forward.2} parent=5 // pred_check_branch
      %683 = sbr.rel (%p681) target = $region56
    $region55: #{inception_aux_forward.2} parent=5 // pred_region
      %s684 = ssub.s32 %s11, 2
      // Predicated region
      $region57: #{inception_aux_forward.2} parent=55 // pred_check
        %p685 = pneg %p169
      $region58: #{inception_aux_forward.2} parent=55 // pred_check_branch
        %687 = sbr.rel (%p685) target = $region60
      $region59: #{inception_aux_forward.2} parent=55 // pred_region
        %s688 = smul.u32 4, %s22
        %p689 = scmp.lt.s32.totalorder %s688, 7
        %s690 = scalar_select %p689, %s688, 7
        %s691 = smul.addr %s690, 4
        %s692 = scalar_lea.vmem %s5, %s691
      $region60: #{inception_aux_forward.2} parent=55 // pred_fallthru
        _
    $region56: #{inception_aux_forward.2} parent=5 // pred_fallthru
      _
  $region6: #{inception_aux_forward.2} parent=0 // loop_footer
    %s15 = sadd.s32 1, %s11
  $region7: #{inception_aux_forward.2} parent=0 // loop_footer_branch
    %10 = sbr.rel target = $region3
  $region8: #{inception_aux_forward.2} parent=0 // loop_exit
    _

// kernel: inception_aux_forward.3
$region0: #{inception_aux_forward.3}
  #allocation0 [shape = 'u32[]', space=smem, size = 0x4, offset = 0x4, fixed_abs, tag = 'smem constant byte address 0x4 - core index']
  #allocation1 [shape = 'u32[144,128]{1,0:T(1,128)}', space=vmem, size = 0x12000, scoped, tag = 'internal scratch']
  %s0 = inlined_call_operand.vmem [shape: bf16[16,3200], index: 0, kind: input, shape index: {}]
  %s1 = inlined_call_operand.vmem [shape: bf16[3200,128], index: 1, kind: input, shape index: {}]
  %s2 = inlined_call_operand.vmem [shape: f32[1,128], index: 2, kind: input, shape index: {}]
  %s3 = inlined_call_operand.vmem [shape: f32[16,128], index: 3, kind: output, shape index: {}]
  %s4 = sld [smem:[#allocation0]]
  $region22: #{inception_aux_forward.3} parent=0
    _
  %s6 = ssub.s32 1, %s4
  %s7 = scalar_select 0, %s6, %s4
  // Predicated region
  $region2: #{inception_aux_forward.3} parent=0 // pred_check
    _
  $region3: #{inception_aux_forward.3} parent=0 // pred_check_branch
    %9 = sbr.rel (0) target = $region5
  $region4: #{inception_aux_forward.3} parent=0 // pred_region
    _
  $region5: #{inception_aux_forward.3} parent=0 // pred_fallthru
    _
  // Predicated region
  $region6: #{inception_aux_forward.3} parent=0 // pred_check
    _
  $region7: #{inception_aux_forward.3} parent=0 // pred_check_branch
    %11 = sbr.rel (0) target = $region9
  $region8: #{inception_aux_forward.3} parent=0 // pred_region
    _
  $region9: #{inception_aux_forward.3} parent=0 // pred_fallthru
    _
  // Predicated region
  $region10: #{inception_aux_forward.3} parent=0 // pred_check
    _
  $region11: #{inception_aux_forward.3} parent=0 // pred_check_branch
    %13 = sbr.rel (0) target = $region13
  $region12: #{inception_aux_forward.3} parent=0 // pred_region
    _
  $region13: #{inception_aux_forward.3} parent=0 // pred_fallthru
    _
  %v15 = vld [vmem:[%s0] sm:$0xff]
  %v16 = vld [vmem:[%s0 + $0x8] sm:$0xff]
  %v17 = vld [vmem:[%s0 + $0x10] sm:$0xff]
  %v18 = vld [vmem:[%s0 + $0x18] sm:$0xff]
  %v19 = vld [vmem:[%s0 + $0x20] sm:$0xff]
  %v20 = vld [vmem:[%s0 + $0x28] sm:$0xff]
  %v21 = vld [vmem:[%s0 + $0x30] sm:$0xff]
  %v22 = vld [vmem:[%s0 + $0x38] sm:$0xff]
  %v23 = vld [vmem:[%s0 + $0x40] sm:$0xff]
  %v24 = vld [vmem:[%s0 + $0x48] sm:$0xff]
  %v25 = vld [vmem:[%s0 + $0x50] sm:$0xff]
  %v26 = vld [vmem:[%s0 + $0x58] sm:$0xff]
  %v27 = vld [vmem:[%s0 + $0x60] sm:$0xf]
  %v28 = vld [vmem:[%s0 + $0x64] sm:$0xff]
  %v29 = vld [vmem:[%s0 + $0x6c] sm:$0xff]
  %v30 = vld [vmem:[%s0 + $0x74] sm:$0xff]
  %v31 = vld [vmem:[%s0 + $0x7c] sm:$0xff]
  %v32 = vld [vmem:[%s0 + $0x84] sm:$0xff]
  %v33 = vld [vmem:[%s0 + $0x8c] sm:$0xff]
  %v34 = vld [vmem:[%s0 + $0x94] sm:$0xff]
  %v35 = vld [vmem:[%s0 + $0x9c] sm:$0xff]
  %v36 = vld [vmem:[%s0 + $0xa4] sm:$0xff]
  %v37 = vld [vmem:[%s0 + $0xac] sm:$0xff]
  %v38 = vld [vmem:[%s0 + $0xb4] sm:$0xff]
  %v39 = vld [vmem:[%s0 + $0xbc] sm:$0xff]
  %v40 = vld [vmem:[%s0 + $0xc4] sm:$0xf]
  %v41 = vld [vmem:[%s1] sm:$0xf]
  %v42 = vld [vmem:[%s1 + $0x4] sm:$0xf]
  %v43 = vld [vmem:[%s1 + $0x8] sm:$0xf]
  %v44 = vld [vmem:[%s1 + $0xc] sm:$0xf]
  %v45 = vld [vmem:[%s1 + $0x10] sm:$0xf]
  %v46 = vld [vmem:[%s1 + $0x14] sm:$0xf]
  %v47 = vld [vmem:[%s1 + $0x18] sm:$0xf]
  %v48 = vld [vmem:[%s1 + $0x1c] sm:$0xf]
  %v49 = vld [vmem:[%s1 + $0x20] sm:$0xf]
  %v50 = vld [vmem:[%s1 + $0x24] sm:$0xf]
  %v51 = vld [vmem:[%s1 + $0x28] sm:$0xf]
  %v52 = vld [vmem:[%s1 + $0x2c] sm:$0xf]
  %v53 = vld [vmem:[%s1 + $0x30] sm:$0xf]
  %v54 = vld [vmem:[%s1 + $0x34] sm:$0xf]
  %v55 = vld [vmem:[%s1 + $0x38] sm:$0xf]
  %v56 = vld [vmem:[%s1 + $0x3c] sm:$0xf]
  %v57 = vld [vmem:[%s1 + $0x40] sm:$0xf]
  %v58 = vld [vmem:[%s1 + $0x44] sm:$0xf]
  %v59 = vld [vmem:[%s1 + $0x48] sm:$0xf]
  %v60 = vld [vmem:[%s1 + $0x4c] sm:$0xf]
  %v61 = vld [vmem:[%s1 + $0x50] sm:$0xf]
  %v62 = vld [vmem:[%s1 + $0x54] sm:$0xf]
  %v63 = vld [vmem:[%s1 + $0x58] sm:$0xf]
  %v64 = vld [vmem:[%s1 + $0x5c] sm:$0xf]
  %v65 = vld [vmem:[%s1 + $0x60] sm:$0xf]
  %v66 = vld [vmem:[%s1 + $0x64] sm:$0xf]
  %v67 = vld [vmem:[%s1 + $0x68] sm:$0xf]
  %v68 = vld [vmem:[%s1 + $0x6c] sm:$0xf]
  %v69 = vld [vmem:[%s1 + $0x70] sm:$0xf]
  %v70 = vld [vmem:[%s1 + $0x74] sm:$0xf]
  %v71 = vld [vmem:[%s1 + $0x78] sm:$0xf]
  %v72 = vld [vmem:[%s1 + $0x7c] sm:$0xf]
  %v73 = vld [vmem:[%s1 + $0x80] sm:$0xf]
  %v74 = vld [vmem:[%s1 + $0x84] sm:$0xf]
  %v75 = vld [vmem:[%s1 + $0x88] sm:$0xf]
  %v76 = vld [vmem:[%s1 + $0x8c] sm:$0xf]
  %v77 = vld [vmem:[%s1 + $0x90] sm:$0xf]
  %v78 = vld [vmem:[%s1 + $0x94] sm:$0xf]
  %v79 = vld [vmem:[%s1 + $0x98] sm:$0xf]
  %v80 = vld [vmem:[%s1 + $0x9c] sm:$0xf]
  %v81 = vld [vmem:[%s1 + $0xa0] sm:$0xf]
  %v82 = vld [vmem:[%s1 + $0xa4] sm:$0xf]
  %v83 = vld [vmem:[%s1 + $0xa8] sm:$0xf]
  %v84 = vld [vmem:[%s1 + $0xac] sm:$0xf]
  %v85 = vld [vmem:[%s1 + $0xb0] sm:$0xf]
  %v86 = vld [vmem:[%s1 + $0xb4] sm:$0xf]
  %v87 = vld [vmem:[%s1 + $0xb8] sm:$0xf]
  %v88 = vld [vmem:[%s1 + $0xbc] sm:$0xf]
  %v89 = vld [vmem:[%s1 + $0xc0] sm:$0xf]
  %v90 = vld [vmem:[%s1 + $0xc4] sm:$0xf]
  %v91 = vld [vmem:[%s1 + $0xc8] sm:$0xf]
  %v92 = vld [vmem:[%s1 + $0xcc] sm:$0xf]
  %v93 = vld [vmem:[%s1 + $0xd0] sm:$0xf]
  %v94 = vld [vmem:[%s1 + $0xd4] sm:$0xf]
  %v95 = vld [vmem:[%s1 + $0xd8] sm:$0xf]
  %v96 = vld [vmem:[%s1 + $0xdc] sm:$0xf]
  %v97 = vld [vmem:[%s1 + $0xe0] sm:$0xf]
  %v98 = vld [vmem:[%s1 + $0xe4] sm:$0xf]
  %v99 = vld [vmem:[%s1 + $0xe8] sm:$0xf]
  %v100 = vld [vmem:[%s1 + $0xec] sm:$0xf]
  %v101 = vld [vmem:[%s1 + $0xf0] sm:$0xf]
  %v102 = vld [vmem:[%s1 + $0xf4] sm:$0xf]
  %v103 = vld [vmem:[%s1 + $0xf8] sm:$0xf]
  %v104 = vld [vmem:[%s1 + $0xfc] sm:$0xf]
  %v105 = vld [vmem:[%s1 + $0x100] sm:$0xf]
  %v106 = vld [vmem:[%s1 + $0x104] sm:$0xf]
  %v107 = vld [vmem:[%s1 + $0x108] sm:$0xf]
  %v108 = vld [vmem:[%s1 + $0x10c] sm:$0xf]
  %v109 = vld [vmem:[%s1 + $0x110] sm:$0xf]
  %v110 = vld [vmem:[%s1 + $0x114] sm:$0xf]
  %v111 = vld [vmem:[%s1 + $0x118] sm:$0xf]
  %v112 = vld [vmem:[%s1 + $0x11c] sm:$0xf]
  %v113 = vld [vmem:[%s1 + $0x120] sm:$0xf]
  %v114 = vld [vmem:[%s1 + $0x124] sm:$0xf]
  %v115 = vld [vmem:[%s1 + $0x128] sm:$0xf]
  %v116 = vld [vmem:[%s1 + $0x12c] sm:$0xf]
  %v117 = vld [vmem:[%s1 + $0x130] sm:$0xf]
  %v118 = vld [vmem:[%s1 + $0x134] sm:$0xf]
  %v119 = vld [vmem:[%s1 + $0x138] sm:$0xf]
  %v120 = vld [vmem:[%s1 + $0x13c] sm:$0xf]
  %v121 = vld [vmem:[%s1 + $0x140] sm:$0xf]
  %v122 = vld [vmem:[%s1 + $0x144] sm:$0xf]
  %v123 = vld [vmem:[%s1 + $0x148] sm:$0xf]
  %v124 = vld [vmem:[%s1 + $0x14c] sm:$0xf]
  %v125 = vld [vmem:[%s1 + $0x150] sm:$0xf]
  %v126 = vld [vmem:[%s1 + $0x154] sm:$0xf]
  %v127 = vld [vmem:[%s1 + $0x158] sm:$0xf]
  %v128 = vld [vmem:[%s1 + $0x15c] sm:$0xf]
  %v129 = vld [vmem:[%s1 + $0x160] sm:$0xf]
  %v130 = vld [vmem:[%s1 + $0x164] sm:$0xf]
  %v131 = vld [vmem:[%s1 + $0x168] sm:$0xf]
  %v132 = vld [vmem:[%s1 + $0x16c] sm:$0xf]
  %v133 = vld [vmem:[%s1 + $0x170] sm:$0xf]
  %v134 = vld [vmem:[%s1 + $0x174] sm:$0xf]
  %v135 = vld [vmem:[%s1 + $0x178] sm:$0xf]
  %v136 = vld [vmem:[%s1 + $0x17c] sm:$0xf]
  %v137 = vld [vmem:[%s1 + $0x180] sm:$0xf]
  %v138 = vld [vmem:[%s1 + $0x184] sm:$0xf]
  %v139 = vld [vmem:[%s1 + $0x188] sm:$0xf]
  %v140 = vld [vmem:[%s1 + $0x18c] sm:$0xf]
  %v141 = vld [vmem:[%s1 + $0x190] sm:$0xf]
  %v142 = vld [vmem:[%s1 + $0x194] sm:$0xf]
  %v143 = vld [vmem:[%s1 + $0x198] sm:$0xf]
  %v144 = vld [vmem:[%s1 + $0x19c] sm:$0xf]
  %v145 = vld [vmem:[%s1 + $0x1a0] sm:$0xf]
  %v146 = vld [vmem:[%s1 + $0x1a4] sm:$0xf]
  %v147 = vld [vmem:[%s1 + $0x1a8] sm:$0xf]
  %v148 = vld [vmem:[%s1 + $0x1ac] sm:$0xf]
  %v149 = vld [vmem:[%s1 + $0x1b0] sm:$0xf]
  %v150 = vld [vmem:[%s1 + $0x1b4] sm:$0xf]
  %v151 = vld [vmem:[%s1 + $0x1b8] sm:$0xf]
  %v152 = vld [vmem:[%s1 + $0x1bc] sm:$0xf]
  %v153 = vld [vmem:[%s1 + $0x1c0] sm:$0xf]
  %v154 = vld [vmem:[%s1 + $0x1c4] sm:$0xf]
  %v155 = vld [vmem:[%s1 + $0x1c8] sm:$0xf]
  %v156 = vld [vmem:[%s1 + $0x1cc] sm:$0xf]
  %v157 = vld [vmem:[%s1 + $0x1d0] sm:$0xf]
  %v158 = vld [vmem:[%s1 + $0x1d4] sm:$0xf]
  %v159 = vld [vmem:[%s1 + $0x1d8] sm:$0xf]
  %v160 = vld [vmem:[%s1 + $0x1dc] sm:$0xf]
  %v161 = vld [vmem:[%s1 + $0x1e0] sm:$0xf]
  %v162 = vld [vmem:[%s1 + $0x1e4] sm:$0xf]
  %v163 = vld [vmem:[%s1 + $0x1e8] sm:$0xf]
  %v164 = vld [vmem:[%s1 + $0x1ec] sm:$0xf]
  %v165 = vld [vmem:[%s1 + $0x1f0] sm:$0xf]
  %v166 = vld [vmem:[%s1 + $0x1f4] sm:$0xf]
  %v167 = vld [vmem:[%s1 + $0x1f8] sm:$0xf]
  %v168 = vld [vmem:[%s1 + $0x1fc] sm:$0xf]
  %v169 = vld [vmem:[%s1 + $0x200] sm:$0xf]
  %v170 = vld [vmem:[%s1 + $0x204] sm:$0xf]
  %v171 = vld [vmem:[%s1 + $0x208] sm:$0xf]
  %v172 = vld [vmem:[%s1 + $0x20c] sm:$0xf]
  %v173 = vld [vmem:[%s1 + $0x210] sm:$0xf]
  %v174 = vld [vmem:[%s1 + $0x214] sm:$0xf]
  %v175 = vld [vmem:[%s1 + $0x218] sm:$0xf]
  %v176 = vld [vmem:[%s1 + $0x21c] sm:$0xf]
  %v177 = vld [vmem:[%s1 + $0x220] sm:$0xf]
  %v178 = vld [vmem:[%s1 + $0x224] sm:$0xf]
  %v179 = vld [vmem:[%s1 + $0x228] sm:$0xf]
  %v180 = vld [vmem:[%s1 + $0x22c] sm:$0xf]
  %v181 = vld [vmem:[%s1 + $0x230] sm:$0xf]
  %v182 = vld [vmem:[%s1 + $0x234] sm:$0xf]
  %v183 = vld [vmem:[%s1 + $0x238] sm:$0xf]
  %v184 = vld [vmem:[%s1 + $0x23c] sm:$0xf]
  %v185 = vld [vmem:[%s1 + $0x240] sm:$0xf]
  %v186 = vld [vmem:[%s1 + $0x244] sm:$0xf]
  %v187 = vld [vmem:[%s1 + $0x248] sm:$0xf]
  %v188 = vld [vmem:[%s1 + $0x24c] sm:$0xf]
  %v189 = vld [vmem:[%s1 + $0x250] sm:$0xf]
  %v190 = vld [vmem:[%s1 + $0x254] sm:$0xf]
  %v191 = vld [vmem:[%s1 + $0x258] sm:$0xf]
  %v192 = vld [vmem:[%s1 + $0x25c] sm:$0xf]
  %v193 = vld [vmem:[%s1 + $0x260] sm:$0xf]
  %v194 = vld [vmem:[%s1 + $0x264] sm:$0xf]
  %v195 = vld [vmem:[%s1 + $0x268] sm:$0xf]
  %v196 = vld [vmem:[%s1 + $0x26c] sm:$0xf]
  %v197 = vld [vmem:[%s1 + $0x270] sm:$0xf]
  %v198 = vld [vmem:[%s1 + $0x274] sm:$0xf]
  %v199 = vld [vmem:[%s1 + $0x278] sm:$0xf]
  %v200 = vld [vmem:[%s1 + $0x27c] sm:$0xf]
  %v201 = vld [vmem:[%s1 + $0x280] sm:$0xf]
  %v202 = vld [vmem:[%s1 + $0x284] sm:$0xf]
  %v203 = vld [vmem:[%s1 + $0x288] sm:$0xf]
  %v204 = vld [vmem:[%s1 + $0x28c] sm:$0xf]
  %v205 = vld [vmem:[%s1 + $0x290] sm:$0xf]
  %v206 = vld [vmem:[%s1 + $0x294] sm:$0xf]
  %v207 = vld [vmem:[%s1 + $0x298] sm:$0xf]
  %v208 = vld [vmem:[%s1 + $0x29c] sm:$0xf]
  %v209 = vld [vmem:[%s1 + $0x2a0] sm:$0xf]
  %v210 = vld [vmem:[%s1 + $0x2a4] sm:$0xf]
  %v211 = vld [vmem:[%s1 + $0x2a8] sm:$0xf]
  %v212 = vld [vmem:[%s1 + $0x2ac] sm:$0xf]
  %v213 = vld [vmem:[%s1 + $0x2b0] sm:$0xf]
  %v214 = vld [vmem:[%s1 + $0x2b4] sm:$0xf]
  %v215 = vld [vmem:[%s1 + $0x2b8] sm:$0xf]
  %v216 = vld [vmem:[%s1 + $0x2bc] sm:$0xf]
  %v217 = vld [vmem:[%s1 + $0x2c0] sm:$0xf]
  %v218 = vld [vmem:[%s1 + $0x2c4] sm:$0xf]
  %v219 = vld [vmem:[%s1 + $0x2c8] sm:$0xf]
  %v220 = vld [vmem:[%s1 + $0x2cc] sm:$0xf]
  %v221 = vld [vmem:[%s1 + $0x2d0] sm:$0xf]
  %v222 = vld [vmem:[%s1 + $0x2d4] sm:$0xf]
  %v223 = vld [vmem:[%s1 + $0x2d8] sm:$0xf]
  %v224 = vld [vmem:[%s1 + $0x2dc] sm:$0xf]
  %v225 = vld [vmem:[%s1 + $0x2e0] sm:$0xf]
  %v226 = vld [vmem:[%s1 + $0x2e4] sm:$0xf]
  %v227 = vld [vmem:[%s1 + $0x2e8] sm:$0xf]
  %v228 = vld [vmem:[%s1 + $0x2ec] sm:$0xf]
  %v229 = vld [vmem:[%s1 + $0x2f0] sm:$0xf]
  %v230 = vld [vmem:[%s1 + $0x2f4] sm:$0xf]
  %v231 = vld [vmem:[%s1 + $0x2f8] sm:$0xf]
  %v232 = vld [vmem:[%s1 + $0x2fc] sm:$0xf]
  %v233 = vld [vmem:[%s1 + $0x300] sm:$0xf]
  %v234 = vld [vmem:[%s1 + $0x304] sm:$0xf]
  %v235 = vld [vmem:[%s1 + $0x308] sm:$0xf]
  %v236 = vld [vmem:[%s1 + $0x30c] sm:$0xf]
  %v237 = vld [vmem:[%s1 + $0x310] sm:$0xf]
  %v238 = vld [vmem:[%s1 + $0x314] sm:$0xf]
  %v239 = vld [vmem:[%s1 + $0x318] sm:$0xf]
  %v240 = vld [vmem:[%s1 + $0x31c] sm:$0xf]
  %v241 = vld [vmem:[%s1 + $0x320] sm:$0xf]
  %v242 = vld [vmem:[%s1 + $0x324] sm:$0xf]
  %v243 = vld [vmem:[%s1 + $0x328] sm:$0xf]
  %v244 = vld [vmem:[%s1 + $0x32c] sm:$0xf]
  %v245 = vld [vmem:[%s1 + $0x330] sm:$0xf]
  %v246 = vld [vmem:[%s1 + $0x334] sm:$0xf]
  %v247 = vld [vmem:[%s1 + $0x338] sm:$0xf]
  %v248 = vld [vmem:[%s1 + $0x33c] sm:$0xf]
  %v249 = vld [vmem:[%s1 + $0x340] sm:$0xf]
  %v250 = vld [vmem:[%s1 + $0x344] sm:$0xf]
  %v251 = vld [vmem:[%s1 + $0x348] sm:$0xf]
  %v252 = vld [vmem:[%s1 + $0x34c] sm:$0xf]
  %v253 = vld [vmem:[%s1 + $0x350] sm:$0xf]
  %v254 = vld [vmem:[%s1 + $0x354] sm:$0xf]
  %v255 = vld [vmem:[%s1 + $0x358] sm:$0xf]
  %v256 = vld [vmem:[%s1 + $0x35c] sm:$0xf]
  %v257 = vld [vmem:[%s1 + $0x360] sm:$0xf]
  %v258 = vld [vmem:[%s1 + $0x364] sm:$0xf]
  %v259 = vld [vmem:[%s1 + $0x368] sm:$0xf]
  %v260 = vld [vmem:[%s1 + $0x36c] sm:$0xf]
  %v261 = vld [vmem:[%s1 + $0x370] sm:$0xf]
  %v262 = vld [vmem:[%s1 + $0x374] sm:$0xf]
  %v263 = vld [vmem:[%s1 + $0x378] sm:$0xf]
  %v264 = vld [vmem:[%s1 + $0x37c] sm:$0xf]
  %v265 = vld [vmem:[%s1 + $0x380] sm:$0xf]
  %v266 = vld [vmem:[%s1 + $0x384] sm:$0xf]
  %v267 = vld [vmem:[%s1 + $0x388] sm:$0xf]
  %v268 = vld [vmem:[%s1 + $0x38c] sm:$0xf]
  %v269 = vld [vmem:[%s1 + $0x390] sm:$0xf]
  %v270 = vld [vmem:[%s1 + $0x394] sm:$0xf]
  %v271 = vld [vmem:[%s1 + $0x398] sm:$0xf]
  %v272 = vld [vmem:[%s1 + $0x39c] sm:$0xf]
  %v273 = vld [vmem:[%s1 + $0x3a0] sm:$0xf]
  %v274 = vld [vmem:[%s1 + $0x3a4] sm:$0xf]
  %v275 = vld [vmem:[%s1 + $0x3a8] sm:$0xf]
  %v276 = vld [vmem:[%s1 + $0x3ac] sm:$0xf]
  %v277 = vld [vmem:[%s1 + $0x3b0] sm:$0xf]
  %v278 = vld [vmem:[%s1 + $0x3b4] sm:$0xf]
  %v279 = vld [vmem:[%s1 + $0x3b8] sm:$0xf]
  %v280 = vld [vmem:[%s1 + $0x3bc] sm:$0xf]
  %v281 = vld [vmem:[%s1 + $0x3c0] sm:$0xf]
  %v282 = vld [vmem:[%s1 + $0x3c4] sm:$0xf]
  %v283 = vld [vmem:[%s1 + $0x3c8] sm:$0xf]
  %v284 = vld [vmem:[%s1 + $0x3cc] sm:$0xf]
  %v285 = vld [vmem:[%s1 + $0x3d0] sm:$0xf]
  %v286 = vld [vmem:[%s1 + $0x3d4] sm:$0xf]
  %v287 = vld [vmem:[%s1 + $0x3d8] sm:$0xf]
  %v288 = vld [vmem:[%s1 + $0x3dc] sm:$0xf]
  %v289 = vld [vmem:[%s1 + $0x3e0] sm:$0xf]
  %v290 = vld [vmem:[%s1 + $0x3e4] sm:$0xf]
  %v291 = vld [vmem:[%s1 + $0x3e8] sm:$0xf]
  %v292 = vld [vmem:[%s1 + $0x3ec] sm:$0xf]
  %v293 = vld [vmem:[%s1 + $0x3f0] sm:$0xf]
  %v294 = vld [vmem:[%s1 + $0x3f4] sm:$0xf]
  %v295 = vld [vmem:[%s1 + $0x3f8] sm:$0xf]
  %v296 = vld [vmem:[%s1 + $0x3fc] sm:$0xf]
  %v297 = vld [vmem:[%s1 + $0x400] sm:$0xf]
  %v298 = vld [vmem:[%s1 + $0x404] sm:$0xf]
  %v299 = vld [vmem:[%s1 + $0x408] sm:$0xf]
  %v300 = vld [vmem:[%s1 + $0x40c] sm:$0xf]
  %v301 = vld [vmem:[%s1 + $0x410] sm:$0xf]
  %v302 = vld [vmem:[%s1 + $0x414] sm:$0xf]
  %v303 = vld [vmem:[%s1 + $0x418] sm:$0xf]
  %v304 = vld [vmem:[%s1 + $0x41c] sm:$0xf]
  %v305 = vld [vmem:[%s1 + $0x420] sm:$0xf]
  %v306 = vld [vmem:[%s1 + $0x424] sm:$0xf]
  %v307 = vld [vmem:[%s1 + $0x428] sm:$0xf]
  %v308 = vld [vmem:[%s1 + $0x42c] sm:$0xf]
  %v309 = vld [vmem:[%s1 + $0x430] sm:$0xf]
  %v310 = vld [vmem:[%s1 + $0x434] sm:$0xf]
  %v311 = vld [vmem:[%s1 + $0x438] sm:$0xf]
  %v312 = vld [vmem:[%s1 + $0x43c] sm:$0xf]
  %v313 = vld [vmem:[%s1 + $0x440] sm:$0xf]
  %v314 = vld [vmem:[%s1 + $0x444] sm:$0xf]
  %v315 = vld [vmem:[%s1 + $0x448] sm:$0xf]
  %v316 = vld [vmem:[%s1 + $0x44c] sm:$0xf]
  %v317 = vld [vmem:[%s1 + $0x450] sm:$0xf]
  %v318 = vld [vmem:[%s1 + $0x454] sm:$0xf]
  %v319 = vld [vmem:[%s1 + $0x458] sm:$0xf]
  %v320 = vld [vmem:[%s1 + $0x45c] sm:$0xf]
  %v321 = vld [vmem:[%s1 + $0x460] sm:$0xf]
  %v322 = vld [vmem:[%s1 + $0x464] sm:$0xf]
  %v323 = vld [vmem:[%s1 + $0x468] sm:$0xf]
  %v324 = vld [vmem:[%s1 + $0x46c] sm:$0xf]
  %v325 = vld [vmem:[%s1 + $0x470] sm:$0xf]
  %v326 = vld [vmem:[%s1 + $0x474] sm:$0xf]
  %v327 = vld [vmem:[%s1 + $0x478] sm:$0xf]
  %v328 = vld [vmem:[%s1 + $0x47c] sm:$0xf]
  %v329 = vld [vmem:[%s1 + $0x480] sm:$0xf]
  %v330 = vld [vmem:[%s1 + $0x484] sm:$0xf]
  %v331 = vld [vmem:[%s1 + $0x488] sm:$0xf]
  %v332 = vld [vmem:[%s1 + $0x48c] sm:$0xf]
  %v333 = vld [vmem:[%s1 + $0x490] sm:$0xf]
  %v334 = vld [vmem:[%s1 + $0x494] sm:$0xf]
  %v335 = vld [vmem:[%s1 + $0x498] sm:$0xf]
  %v336 = vld [vmem:[%s1 + $0x49c] sm:$0xf]
  %v337 = vld [vmem:[%s1 + $0x4a0] sm:$0xf]
  %v338 = vld [vmem:[%s1 + $0x4a4] sm:$0xf]
  %v339 = vld [vmem:[%s1 + $0x4a8] sm:$0xf]
  %v340 = vld [vmem:[%s1 + $0x4ac] sm:$0xf]
  %v341 = vld [vmem:[%s1 + $0x4b0] sm:$0xf]
  %v342 = vld [vmem:[%s1 + $0x4b4] sm:$0xf]
  %v343 = vld [vmem:[%s1 + $0x4b8] sm:$0xf]
  %v344 = vld [vmem:[%s1 + $0x4bc] sm:$0xf]
  %v345 = vld [vmem:[%s1 + $0x4c0] sm:$0xf]
  %v346 = vld [vmem:[%s1 + $0x4c4] sm:$0xf]
  %v347 = vld [vmem:[%s1 + $0x4c8] sm:$0xf]
  %v348 = vld [vmem:[%s1 + $0x4cc] sm:$0xf]
  %v349 = vld [vmem:[%s1 + $0x4d0] sm:$0xf]
  %v350 = vld [vmem:[%s1 + $0x4d4] sm:$0xf]
  %v351 = vld [vmem:[%s1 + $0x4d8] sm:$0xf]
  %v352 = vld [vmem:[%s1 + $0x4dc] sm:$0xf]
  %v353 = vld [vmem:[%s1 + $0x4e0] sm:$0xf]
  %v354 = vld [vmem:[%s1 + $0x4e4] sm:$0xf]
  %v355 = vld [vmem:[%s1 + $0x4e8] sm:$0xf]
  %v356 = vld [vmem:[%s1 + $0x4ec] sm:$0xf]
  %v357 = vld [vmem:[%s1 + $0x4f0] sm:$0xf]
  %v358 = vld [vmem:[%s1 + $0x4f4] sm:$0xf]
  %v359 = vld [vmem:[%s1 + $0x4f8] sm:$0xf]
  %v360 = vld [vmem:[%s1 + $0x4fc] sm:$0xf]
  %v361 = vld [vmem:[%s1 + $0x500] sm:$0xf]
  %v362 = vld [vmem:[%s1 + $0x504] sm:$0xf]
  %v363 = vld [vmem:[%s1 + $0x508] sm:$0xf]
  %v364 = vld [vmem:[%s1 + $0x50c] sm:$0xf]
  %v365 = vld [vmem:[%s1 + $0x510] sm:$0xf]
  %v366 = vld [vmem:[%s1 + $0x514] sm:$0xf]
  %v367 = vld [vmem:[%s1 + $0x518] sm:$0xf]
  %v368 = vld [vmem:[%s1 + $0x51c] sm:$0xf]
  %v369 = vld [vmem:[%s1 + $0x520] sm:$0xf]
  %v370 = vld [vmem:[%s1 + $0x524] sm:$0xf]
  %v371 = vld [vmem:[%s1 + $0x528] sm:$0xf]
  %v372 = vld [vmem:[%s1 + $0x52c] sm:$0xf]
  %v373 = vld [vmem:[%s1 + $0x530] sm:$0xf]
  %v374 = vld [vmem:[%s1 + $0x534] sm:$0xf]
  %v375 = vld [vmem:[%s1 + $0x538] sm:$0xf]
  %v376 = vld [vmem:[%s1 + $0x53c] sm:$0xf]
  %v377 = vld [vmem:[%s1 + $0x540] sm:$0xf]
  %v378 = vld [vmem:[%s1 + $0x544] sm:$0xf]
  %v379 = vld [vmem:[%s1 + $0x548] sm:$0xf]
  %v380 = vld [vmem:[%s1 + $0x54c] sm:$0xf]
  %v381 = vld [vmem:[%s1 + $0x550] sm:$0xf]
  %v382 = vld [vmem:[%s1 + $0x554] sm:$0xf]
  %v383 = vld [vmem:[%s1 + $0x558] sm:$0xf]
  %v384 = vld [vmem:[%s1 + $0x55c] sm:$0xf]
  %v385 = vld [vmem:[%s1 + $0x560] sm:$0xf]
  %v386 = vld [vmem:[%s1 + $0x564] sm:$0xf]
  %v387 = vld [vmem:[%s1 + $0x568] sm:$0xf]
  %v388 = vld [vmem:[%s1 + $0x56c] sm:$0xf]
  %v389 = vld [vmem:[%s1 + $0x570] sm:$0xf]
  %v390 = vld [vmem:[%s1 + $0x574] sm:$0xf]
  %v391 = vld [vmem:[%s1 + $0x578] sm:$0xf]
  %v392 = vld [vmem:[%s1 + $0x57c] sm:$0xf]
  %v393 = vld [vmem:[%s1 + $0x580] sm:$0xf]
  %v394 = vld [vmem:[%s1 + $0x584] sm:$0xf]
  %v395 = vld [vmem:[%s1 + $0x588] sm:$0xf]
  %v396 = vld [vmem:[%s1 + $0x58c] sm:$0xf]
  %v397 = vld [vmem:[%s1 + $0x590] sm:$0xf]
  %v398 = vld [vmem:[%s1 + $0x594] sm:$0xf]
  %v399 = vld [vmem:[%s1 + $0x598] sm:$0xf]
  %v400 = vld [vmem:[%s1 + $0x59c] sm:$0xf]
  %v401 = vld [vmem:[%s1 + $0x5a0] sm:$0xf]
  %v402 = vld [vmem:[%s1 + $0x5a4] sm:$0xf]
  %v403 = vld [vmem:[%s1 + $0x5a8] sm:$0xf]
  %v404 = vld [vmem:[%s1 + $0x5ac] sm:$0xf]
  %v405 = vld [vmem:[%s1 + $0x5b0] sm:$0xf]
  %v406 = vld [vmem:[%s1 + $0x5b4] sm:$0xf]
  %v407 = vld [vmem:[%s1 + $0x5b8] sm:$0xf]
  %v408 = vld [vmem:[%s1 + $0x5bc] sm:$0xf]
  %v409 = vld [vmem:[%s1 + $0x5c0] sm:$0xf]
  %v410 = vld [vmem:[%s1 + $0x5c4] sm:$0xf]
  %v411 = vld [vmem:[%s1 + $0x5c8] sm:$0xf]
  %v412 = vld [vmem:[%s1 + $0x5cc] sm:$0xf]
  %v413 = vld [vmem:[%s1 + $0x5d0] sm:$0xf]
  %v414 = vld [vmem:[%s1 + $0x5d4] sm:$0xf]
  %v415 = vld [vmem:[%s1 + $0x5d8] sm:$0xf]
  %v416 = vld [vmem:[%s1 + $0x5dc] sm:$0xf]
  %v417 = vld [vmem:[%s1 + $0x5e0] sm:$0xf]
  %v418 = vld [vmem:[%s1 + $0x5e4] sm:$0xf]
  %v419 = vld [vmem:[%s1 + $0x5e8] sm:$0xf]
  %v420 = vld [vmem:[%s1 + $0x5ec] sm:$0xf]
  %v421 = vld [vmem:[%s1 + $0x5f0] sm:$0xf]
  %v422 = vld [vmem:[%s1 + $0x5f4] sm:$0xf]
  %v423 = vld [vmem:[%s1 + $0x5f8] sm:$0xf]
  %v424 = vld [vmem:[%s1 + $0x5fc] sm:$0xf]
  %v425 = vld [vmem:[%s1 + $0x600] sm:$0xf]
  %v426 = vld [vmem:[%s1 + $0x604] sm:$0xf]
  %v427 = vld [vmem:[%s1 + $0x608] sm:$0xf]
  %v428 = vld [vmem:[%s1 + $0x60c] sm:$0xf]
  %v429 = vld [vmem:[%s1 + $0x610] sm:$0xf]
  %v430 = vld [vmem:[%s1 + $0x614] sm:$0xf]
  %v431 = vld [vmem:[%s1 + $0x618] sm:$0xf]
  %v432 = vld [vmem:[%s1 + $0x61c] sm:$0xf]
  %v433 = vld [vmem:[%s1 + $0x620] sm:$0xf]
  %v434 = vld [vmem:[%s1 + $0x624] sm:$0xf]
  %v435 = vld [vmem:[%s1 + $0x628] sm:$0xf]
  %v436 = vld [vmem:[%s1 + $0x62c] sm:$0xf]
  %v437 = vld [vmem:[%s1 + $0x630] sm:$0xf]
  %v438 = vld [vmem:[%s1 + $0x634] sm:$0xf]
  %v439 = vld [vmem:[%s1 + $0x638] sm:$0xf]
  %v440 = vld [vmem:[%s1 + $0x63c] sm:$0xf]
  %v441 = vld [vmem:[%s2] sm:$0x1]
  %v443 = vlaneseq
  %v444 = vshrl.u32 %v443, 7
  %v445 = vsub.s32 0, %v444
  %v446 = vrot.slane %v441, %v445
  %v474 = vunpack.c.l.b16 %v15
  %v475 = vunpack.c.h.b16 %v15
  %v476 = vunpack.c.l.b16 %v16
  %v477 = vunpack.c.h.b16 %v16
  %v478 = vunpack.c.l.b16 %v17
  %v479 = vunpack.c.h.b16 %v17
  %v480 = vunpack.c.l.b16 %v18
  %v481 = vunpack.c.h.b16 %v18
  %v482 = vunpack.c.l.b16 %v19
  %v483 = vunpack.c.h.b16 %v19
  %v484 = vunpack.c.l.b16 %v20
  %v485 = vunpack.c.h.b16 %v20
  %v486 = vunpack.c.l.b16 %v21
  %v487 = vunpack.c.h.b16 %v21
  %v488 = vunpack.c.l.b16 %v22
  %v489 = vunpack.c.h.b16 %v22
  %v490 = vunpack.c.l.b16 %v23
  %v491 = vunpack.c.h.b16 %v23
  %v492 = vunpack.c.l.b16 %v24
  %v493 = vunpack.c.h.b16 %v24
  %v494 = vunpack.c.l.b16 %v25
  %v495 = vunpack.c.h.b16 %v25
  %v496 = vunpack.c.l.b16 %v26
  %v497 = vunpack.c.h.b16 %v26
  %v498 = vunpack.c.l.b16 %v27
  %v499 = vunpack.c.l.b16 %v28
  %v500 = vunpack.c.h.b16 %v28
  %v501 = vunpack.c.l.b16 %v29
  %v502 = vunpack.c.h.b16 %v29
  %v503 = vunpack.c.l.b16 %v30
  %v504 = vunpack.c.h.b16 %v30
  %v505 = vunpack.c.l.b16 %v31
  %v506 = vunpack.c.h.b16 %v31
  %v507 = vunpack.c.l.b16 %v32
  %v508 = vunpack.c.h.b16 %v32
  %v509 = vunpack.c.l.b16 %v33
  %v510 = vunpack.c.h.b16 %v33
  %v511 = vunpack.c.l.b16 %v34
  %v512 = vunpack.c.h.b16 %v34
  %v513 = vunpack.c.l.b16 %v35
  %v514 = vunpack.c.h.b16 %v35
  %v515 = vunpack.c.l.b16 %v36
  %v516 = vunpack.c.h.b16 %v36
  %v517 = vunpack.c.l.b16 %v37
  %v518 = vunpack.c.h.b16 %v37
  %v519 = vunpack.c.l.b16 %v38
  %v520 = vunpack.c.h.b16 %v38
  %v521 = vunpack.c.l.b16 %v39
  %v522 = vunpack.c.h.b16 %v39
  %v523 = vunpack.c.l.b16 %v40
  %v524 = vpack.c.b16 %v499, %v474
  %v525 = vpack.c.b16 %v500, %v475
  %v526 = vpack.c.b16 %v501, %v476
  %v527 = vpack.c.b16 %v502, %v477
  %v528 = vpack.c.b16 %v503, %v478
  %v529 = vpack.c.b16 %v504, %v479
  %v530 = vpack.c.b16 %v505, %v480
  %v531 = vpack.c.b16 %v506, %v481
  %v532 = vpack.c.b16 %v507, %v482
  %v533 = vpack.c.b16 %v508, %v483
  %v534 = vpack.c.b16 %v509, %v484
  %v535 = vpack.c.b16 %v510, %v485
  %v536 = vpack.c.b16 %v511, %v486
  %v537 = vpack.c.b16 %v512, %v487
  %v538 = vpack.c.b16 %v513, %v488
  %v539 = vpack.c.b16 %v514, %v489
  %v540 = vpack.c.b16 %v515, %v490
  %v541 = vpack.c.b16 %v516, %v491
  %v542 = vpack.c.b16 %v517, %v492
  %v543 = vpack.c.b16 %v518, %v493
  %v544 = vpack.c.b16 %v519, %v494
  %v545 = vpack.c.b16 %v520, %v495
  %v546 = vpack.c.b16 %v521, %v496
  %v547 = vpack.c.b16 %v522, %v497
  %v548 = vpack.c.b16 %v523, %v498
  %v974 = vunpack.c.l.b16 %v41
  %v975 = vunpack.c.l.b16 %v42
  %v976 = vunpack.c.l.b16 %v43
  %v977 = vunpack.c.l.b16 %v44
  %v978 = vunpack.c.l.b16 %v45
  %v979 = vunpack.c.l.b16 %v46
  %v980 = vunpack.c.l.b16 %v47
  %v981 = vunpack.c.l.b16 %v48
  %v982 = vunpack.c.l.b16 %v49
  %v983 = vunpack.c.l.b16 %v50
  %v984 = vunpack.c.l.b16 %v51
  %v985 = vunpack.c.l.b16 %v52
  %v986 = vunpack.c.l.b16 %v53
  %v987 = vunpack.c.l.b16 %v54
  %v988 = vunpack.c.l.b16 %v55
  %v989 = vunpack.c.l.b16 %v56
  %v990 = vunpack.c.l.b16 %v57
  %v991 = vunpack.c.l.b16 %v58
  %v992 = vunpack.c.l.b16 %v59
  %v993 = vunpack.c.l.b16 %v60
  %v994 = vunpack.c.l.b16 %v61
  %v995 = vunpack.c.l.b16 %v62
  %v996 = vunpack.c.l.b16 %v63
  %v997 = vunpack.c.l.b16 %v64
  %v998 = vunpack.c.l.b16 %v65
  %v999 = vunpack.c.l.b16 %v66
  %v1000 = vunpack.c.l.b16 %v67
  %v1001 = vunpack.c.l.b16 %v68
  %v1002 = vunpack.c.l.b16 %v69
  %v1003 = vunpack.c.l.b16 %v70
  %v1004 = vunpack.c.l.b16 %v71
  %v1005 = vunpack.c.l.b16 %v72
  %v1006 = vunpack.c.l.b16 %v73
  %v1007 = vunpack.c.l.b16 %v74
  %v1008 = vunpack.c.l.b16 %v75
  %v1009 = vunpack.c.l.b16 %v76
  %v1010 = vunpack.c.l.b16 %v77
  %v1011 = vunpack.c.l.b16 %v78
  %v1012 = vunpack.c.l.b16 %v79
  %v1013 = vunpack.c.l.b16 %v80
  %v1014 = vunpack.c.l.b16 %v81
  %v1015 = vunpack.c.l.b16 %v82
  %v1016 = vunpack.c.l.b16 %v83
  %v1017 = vunpack.c.l.b16 %v84
  %v1018 = vunpack.c.l.b16 %v85
  %v1019 = vunpack.c.l.b16 %v86
  %v1020 = vunpack.c.l.b16 %v87
  %v1021 = vunpack.c.l.b16 %v88
  %v1022 = vunpack.c.l.b16 %v89
  %v1023 = vunpack.c.l.b16 %v90
  %v1024 = vunpack.c.l.b16 %v91
  %v1025 = vunpack.c.l.b16 %v92
  %v1026 = vunpack.c.l.b16 %v93
  %v1027 = vunpack.c.l.b16 %v94
  %v1028 = vunpack.c.l.b16 %v95
  %v1029 = vunpack.c.l.b16 %v96
  %v1030 = vunpack.c.l.b16 %v97
  %v1031 = vunpack.c.l.b16 %v98
  %v1032 = vunpack.c.l.b16 %v99
  %v1033 = vunpack.c.l.b16 %v100
  %v1034 = vunpack.c.l.b16 %v101
  %v1035 = vunpack.c.l.b16 %v102
  %v1036 = vunpack.c.l.b16 %v103
  %v1037 = vunpack.c.l.b16 %v104
  %v1038 = vunpack.c.l.b16 %v105
  %v1039 = vunpack.c.l.b16 %v106
  %v1040 = vunpack.c.l.b16 %v107
  %v1041 = vunpack.c.l.b16 %v108
  %v1042 = vunpack.c.l.b16 %v109
  %v1043 = vunpack.c.l.b16 %v110
  %v1044 = vunpack.c.l.b16 %v111
  %v1045 = vunpack.c.l.b16 %v112
  %v1046 = vunpack.c.l.b16 %v113
  %v1047 = vunpack.c.l.b16 %v114
  %v1048 = vunpack.c.l.b16 %v115
  %v1049 = vunpack.c.l.b16 %v116
  %v1050 = vunpack.c.l.b16 %v117
  %v1051 = vunpack.c.l.b16 %v118
  %v1052 = vunpack.c.l.b16 %v119
  %v1053 = vunpack.c.l.b16 %v120
  %v1054 = vunpack.c.l.b16 %v121
  %v1055 = vunpack.c.l.b16 %v122
  %v1056 = vunpack.c.l.b16 %v123
  %v1057 = vunpack.c.l.b16 %v124
  %v1058 = vunpack.c.l.b16 %v125
  %v1059 = vunpack.c.l.b16 %v126
  %v1060 = vunpack.c.l.b16 %v127
  %v1061 = vunpack.c.l.b16 %v128
  %v1062 = vunpack.c.l.b16 %v129
  %v1063 = vunpack.c.l.b16 %v130
  %v1064 = vunpack.c.l.b16 %v131
  %v1065 = vunpack.c.l.b16 %v132
  %v1066 = vunpack.c.l.b16 %v133
  %v1067 = vunpack.c.l.b16 %v134
  %v1068 = vunpack.c.l.b16 %v135
  %v1069 = vunpack.c.l.b16 %v136
  %v1070 = vunpack.c.l.b16 %v137
  %v1071 = vunpack.c.l.b16 %v138
  %v1072 = vunpack.c.l.b16 %v139
  %v1073 = vunpack.c.l.b16 %v140
  %v1074 = vunpack.c.l.b16 %v141
  %v1075 = vunpack.c.l.b16 %v142
  %v1076 = vunpack.c.l.b16 %v143
  %v1077 = vunpack.c.l.b16 %v144
  %v1078 = vunpack.c.l.b16 %v145
  %v1079 = vunpack.c.l.b16 %v146
  %v1080 = vunpack.c.l.b16 %v147
  %v1081 = vunpack.c.l.b16 %v148
  %v1082 = vunpack.c.l.b16 %v149
  %v1083 = vunpack.c.l.b16 %v150
  %v1084 = vunpack.c.l.b16 %v151
  %v1085 = vunpack.c.l.b16 %v152
  %v1086 = vunpack.c.l.b16 %v153
  %v1087 = vunpack.c.l.b16 %v154
  %v1088 = vunpack.c.l.b16 %v155
  %v1089 = vunpack.c.l.b16 %v156
  %v1090 = vunpack.c.l.b16 %v157
  %v1091 = vunpack.c.l.b16 %v158
  %v1092 = vunpack.c.l.b16 %v159
  %v1093 = vunpack.c.l.b16 %v160
  %v1094 = vunpack.c.l.b16 %v161
  %v1095 = vunpack.c.l.b16 %v162
  %v1096 = vunpack.c.l.b16 %v163
  %v1097 = vunpack.c.l.b16 %v164
  %v1098 = vunpack.c.l.b16 %v165
  %v1099 = vunpack.c.l.b16 %v166
  %v1100 = vunpack.c.l.b16 %v167
  %v1101 = vunpack.c.l.b16 %v168
  %v1102 = vunpack.c.l.b16 %v169
  %v1103 = vunpack.c.l.b16 %v170
  %v1104 = vunpack.c.l.b16 %v171
  %v1105 = vunpack.c.l.b16 %v172
  %v1106 = vunpack.c.l.b16 %v173
  %v1107 = vunpack.c.l.b16 %v174
  %v1108 = vunpack.c.l.b16 %v175
  %v1109 = vunpack.c.l.b16 %v176
  %v1110 = vunpack.c.l.b16 %v177
  %v1111 = vunpack.c.l.b16 %v178
  %v1112 = vunpack.c.l.b16 %v179
  %v1113 = vunpack.c.l.b16 %v180
  %v1114 = vunpack.c.l.b16 %v181
  %v1115 = vunpack.c.l.b16 %v182
  %v1116 = vunpack.c.l.b16 %v183
  %v1117 = vunpack.c.l.b16 %v184
  %v1118 = vunpack.c.l.b16 %v185
  %v1119 = vunpack.c.l.b16 %v186
  %v1120 = vunpack.c.l.b16 %v187
  %v1121 = vunpack.c.l.b16 %v188
  %v1122 = vunpack.c.l.b16 %v189
  %v1123 = vunpack.c.l.b16 %v190
  %v1124 = vunpack.c.l.b16 %v191
  %v1125 = vunpack.c.l.b16 %v192
  %v1126 = vunpack.c.l.b16 %v193
  %v1127 = vunpack.c.l.b16 %v194
  %v1128 = vunpack.c.l.b16 %v195
  %v1129 = vunpack.c.l.b16 %v196
  %v1130 = vunpack.c.l.b16 %v197
  %v1131 = vunpack.c.l.b16 %v198
  %v1132 = vunpack.c.l.b16 %v199
  %v1133 = vunpack.c.l.b16 %v200
  %v1134 = vunpack.c.l.b16 %v201
  %v1135 = vunpack.c.l.b16 %v202
  %v1136 = vunpack.c.l.b16 %v203
  %v1137 = vunpack.c.l.b16 %v204
  %v1138 = vunpack.c.l.b16 %v205
  %v1139 = vunpack.c.l.b16 %v206
  %v1140 = vunpack.c.l.b16 %v207
  %v1141 = vunpack.c.l.b16 %v208
  %v1142 = vunpack.c.l.b16 %v209
  %v1143 = vunpack.c.l.b16 %v210
  %v1144 = vunpack.c.l.b16 %v211
  %v1145 = vunpack.c.l.b16 %v212
  %v1146 = vunpack.c.l.b16 %v213
  %v1147 = vunpack.c.l.b16 %v214
  %v1148 = vunpack.c.l.b16 %v215
  %v1149 = vunpack.c.l.b16 %v216
  %v1150 = vunpack.c.l.b16 %v217
  %v1151 = vunpack.c.l.b16 %v218
  %v1152 = vunpack.c.l.b16 %v219
  %v1153 = vunpack.c.l.b16 %v220
  %v1154 = vunpack.c.l.b16 %v221
  %v1155 = vunpack.c.l.b16 %v222
  %v1156 = vunpack.c.l.b16 %v223
  %v1157 = vunpack.c.l.b16 %v224
  %v1158 = vunpack.c.l.b16 %v225
  %v1159 = vunpack.c.l.b16 %v226
  %v1160 = vunpack.c.l.b16 %v227
  %v1161 = vunpack.c.l.b16 %v228
  %v1162 = vunpack.c.l.b16 %v229
  %v1163 = vunpack.c.l.b16 %v230
  %v1164 = vunpack.c.l.b16 %v231
  %v1165 = vunpack.c.l.b16 %v232
  %v1166 = vunpack.c.l.b16 %v233
  %v1167 = vunpack.c.l.b16 %v234
  %v1168 = vunpack.c.l.b16 %v235
  %v1169 = vunpack.c.l.b16 %v236
  %v1170 = vunpack.c.l.b16 %v237
  %v1171 = vunpack.c.l.b16 %v238
  %v1172 = vunpack.c.l.b16 %v239
  %v1173 = vunpack.c.l.b16 %v240
  %v1174 = vunpack.c.l.b16 %v241
  %v1175 = vunpack.c.l.b16 %v242
  %v1176 = vunpack.c.l.b16 %v243
  %v1177 = vunpack.c.l.b16 %v244
  %v1178 = vunpack.c.l.b16 %v245
  %v1179 = vunpack.c.l.b16 %v246
  %v1180 = vunpack.c.l.b16 %v247
  %v1181 = vunpack.c.l.b16 %v248
  %v1182 = vunpack.c.l.b16 %v249
  %v1183 = vunpack.c.l.b16 %v250
  %v1184 = vunpack.c.l.b16 %v251
  %v1185 = vunpack.c.l.b16 %v252
  %v1186 = vunpack.c.l.b16 %v253
  %v1187 = vunpack.c.l.b16 %v254
  %v1188 = vunpack.c.l.b16 %v255
  %v1189 = vunpack.c.l.b16 %v256
  %v1190 = vunpack.c.l.b16 %v257
  %v1191 = vunpack.c.l.b16 %v258
  %v1192 = vunpack.c.l.b16 %v259
  %v1193 = vunpack.c.l.b16 %v260
  %v1194 = vunpack.c.l.b16 %v261
  %v1195 = vunpack.c.l.b16 %v262
  %v1196 = vunpack.c.l.b16 %v263
  %v1197 = vunpack.c.l.b16 %v264
  %v1198 = vunpack.c.l.b16 %v265
  %v1199 = vunpack.c.l.b16 %v266
  %v1200 = vunpack.c.l.b16 %v267
  %v1201 = vunpack.c.l.b16 %v268
  %v1202 = vunpack.c.l.b16 %v269
  %v1203 = vunpack.c.l.b16 %v270
  %v1204 = vunpack.c.l.b16 %v271
  %v1205 = vunpack.c.l.b16 %v272
  %v1206 = vunpack.c.l.b16 %v273
  %v1207 = vunpack.c.l.b16 %v274
  %v1208 = vunpack.c.l.b16 %v275
  %v1209 = vunpack.c.l.b16 %v276
  %v1210 = vunpack.c.l.b16 %v277
  %v1211 = vunpack.c.l.b16 %v278
  %v1212 = vunpack.c.l.b16 %v279
  %v1213 = vunpack.c.l.b16 %v280
  %v1214 = vunpack.c.l.b16 %v281
  %v1215 = vunpack.c.l.b16 %v282
  %v1216 = vunpack.c.l.b16 %v283
  %v1217 = vunpack.c.l.b16 %v284
  %v1218 = vunpack.c.l.b16 %v285
  %v1219 = vunpack.c.l.b16 %v286
  %v1220 = vunpack.c.l.b16 %v287
  %v1221 = vunpack.c.l.b16 %v288
  %v1222 = vunpack.c.l.b16 %v289
  %v1223 = vunpack.c.l.b16 %v290
  %v1224 = vunpack.c.l.b16 %v291
  %v1225 = vunpack.c.l.b16 %v292
  %v1226 = vunpack.c.l.b16 %v293
  %v1227 = vunpack.c.l.b16 %v294
  %v1228 = vunpack.c.l.b16 %v295
  %v1229 = vunpack.c.l.b16 %v296
  %v1230 = vunpack.c.l.b16 %v297
  %v1231 = vunpack.c.l.b16 %v298
  %v1232 = vunpack.c.l.b16 %v299
  %v1233 = vunpack.c.l.b16 %v300
  %v1234 = vunpack.c.l.b16 %v301
  %v1235 = vunpack.c.l.b16 %v302
  %v1236 = vunpack.c.l.b16 %v303
  %v1237 = vunpack.c.l.b16 %v304
  %v1238 = vunpack.c.l.b16 %v305
  %v1239 = vunpack.c.l.b16 %v306
  %v1240 = vunpack.c.l.b16 %v307
  %v1241 = vunpack.c.l.b16 %v308
  %v1242 = vunpack.c.l.b16 %v309
  %v1243 = vunpack.c.l.b16 %v310
  %v1244 = vunpack.c.l.b16 %v311
  %v1245 = vunpack.c.l.b16 %v312
  %v1246 = vunpack.c.l.b16 %v313
  %v1247 = vunpack.c.l.b16 %v314
  %v1248 = vunpack.c.l.b16 %v315
  %v1249 = vunpack.c.l.b16 %v316
  %v1250 = vunpack.c.l.b16 %v317
  %v1251 = vunpack.c.l.b16 %v318
  %v1252 = vunpack.c.l.b16 %v319
  %v1253 = vunpack.c.l.b16 %v320
  %v1254 = vunpack.c.l.b16 %v321
  %v1255 = vunpack.c.l.b16 %v322
  %v1256 = vunpack.c.l.b16 %v323
  %v1257 = vunpack.c.l.b16 %v324
  %v1258 = vunpack.c.l.b16 %v325
  %v1259 = vunpack.c.l.b16 %v326
  %v1260 = vunpack.c.l.b16 %v327
  %v1261 = vunpack.c.l.b16 %v328
  %v1262 = vunpack.c.l.b16 %v329
  %v1263 = vunpack.c.l.b16 %v330
  %v1264 = vunpack.c.l.b16 %v331
  %v1265 = vunpack.c.l.b16 %v332
  %v1266 = vunpack.c.l.b16 %v333
  %v1267 = vunpack.c.l.b16 %v334
  %v1268 = vunpack.c.l.b16 %v335
  %v1269 = vunpack.c.l.b16 %v336
  %v1270 = vunpack.c.l.b16 %v337
  %v1271 = vunpack.c.l.b16 %v338
  %v1272 = vunpack.c.l.b16 %v339
  %v1273 = vunpack.c.l.b16 %v340
  %v1274 = vunpack.c.l.b16 %v341
  %v1275 = vunpack.c.l.b16 %v342
  %v1276 = vunpack.c.l.b16 %v343
  %v1277 = vunpack.c.l.b16 %v344
  %v1278 = vunpack.c.l.b16 %v345
  %v1279 = vunpack.c.l.b16 %v346
  %v1280 = vunpack.c.l.b16 %v347
  %v1281 = vunpack.c.l.b16 %v348
  %v1282 = vunpack.c.l.b16 %v349
  %v1283 = vunpack.c.l.b16 %v350
  %v1284 = vunpack.c.l.b16 %v351
  %v1285 = vunpack.c.l.b16 %v352
  %v1286 = vunpack.c.l.b16 %v353
  %v1287 = vunpack.c.l.b16 %v354
  %v1288 = vunpack.c.l.b16 %v355
  %v1289 = vunpack.c.l.b16 %v356
  %v1290 = vunpack.c.l.b16 %v357
  %v1291 = vunpack.c.l.b16 %v358
  %v1292 = vunpack.c.l.b16 %v359
  %v1293 = vunpack.c.l.b16 %v360
  %v1294 = vunpack.c.l.b16 %v361
  %v1295 = vunpack.c.l.b16 %v362
  %v1296 = vunpack.c.l.b16 %v363
  %v1297 = vunpack.c.l.b16 %v364
  %v1298 = vunpack.c.l.b16 %v365
  %v1299 = vunpack.c.l.b16 %v366
  %v1300 = vunpack.c.l.b16 %v367
  %v1301 = vunpack.c.l.b16 %v368
  %v1302 = vunpack.c.l.b16 %v369
  %v1303 = vunpack.c.l.b16 %v370
  %v1304 = vunpack.c.l.b16 %v371
  %v1305 = vunpack.c.l.b16 %v372
  %v1306 = vunpack.c.l.b16 %v373
  %v1307 = vunpack.c.l.b16 %v374
  %v1308 = vunpack.c.l.b16 %v375
  %v1309 = vunpack.c.l.b16 %v376
  %v1310 = vunpack.c.l.b16 %v377
  %v1311 = vunpack.c.l.b16 %v378
  %v1312 = vunpack.c.l.b16 %v379
  %v1313 = vunpack.c.l.b16 %v380
  %v1314 = vunpack.c.l.b16 %v381
  %v1315 = vunpack.c.l.b16 %v382
  %v1316 = vunpack.c.l.b16 %v383
  %v1317 = vunpack.c.l.b16 %v384
  %v1318 = vunpack.c.l.b16 %v385
  %v1319 = vunpack.c.l.b16 %v386
  %v1320 = vunpack.c.l.b16 %v387
  %v1321 = vunpack.c.l.b16 %v388
  %v1322 = vunpack.c.l.b16 %v389
  %v1323 = vunpack.c.l.b16 %v390
  %v1324 = vunpack.c.l.b16 %v391
  %v1325 = vunpack.c.l.b16 %v392
  %v1326 = vunpack.c.l.b16 %v393
  %v1327 = vunpack.c.l.b16 %v394
  %v1328 = vunpack.c.l.b16 %v395
  %v1329 = vunpack.c.l.b16 %v396
  %v1330 = vunpack.c.l.b16 %v397
  %v1331 = vunpack.c.l.b16 %v398
  %v1332 = vunpack.c.l.b16 %v399
  %v1333 = vunpack.c.l.b16 %v400
  %v1334 = vunpack.c.l.b16 %v401
  %v1335 = vunpack.c.l.b16 %v402
  %v1336 = vunpack.c.l.b16 %v403
  %v1337 = vunpack.c.l.b16 %v404
  %v1338 = vunpack.c.l.b16 %v405
  %v1339 = vunpack.c.l.b16 %v406
  %v1340 = vunpack.c.l.b16 %v407
  %v1341 = vunpack.c.l.b16 %v408
  %v1342 = vunpack.c.l.b16 %v409
  %v1343 = vunpack.c.l.b16 %v410
  %v1344 = vunpack.c.l.b16 %v411
  %v1345 = vunpack.c.l.b16 %v412
  %v1346 = vunpack.c.l.b16 %v413
  %v1347 = vunpack.c.l.b16 %v414
  %v1348 = vunpack.c.l.b16 %v415
  %v1349 = vunpack.c.l.b16 %v416
  %v1350 = vunpack.c.l.b16 %v417
  %v1351 = vunpack.c.l.b16 %v418
  %v1352 = vunpack.c.l.b16 %v419
  %v1353 = vunpack.c.l.b16 %v420
  %v1354 = vunpack.c.l.b16 %v421
  %v1355 = vunpack.c.l.b16 %v422
  %v1356 = vunpack.c.l.b16 %v423
  %v1357 = vunpack.c.l.b16 %v424
  %v1358 = vunpack.c.l.b16 %v425
  %v1359 = vunpack.c.l.b16 %v426
  %v1360 = vunpack.c.l.b16 %v427
  %v1361 = vunpack.c.l.b16 %v428
  %v1362 = vunpack.c.l.b16 %v429
  %v1363 = vunpack.c.l.b16 %v430
  %v1364 = vunpack.c.l.b16 %v431
  %v1365 = vunpack.c.l.b16 %v432
  %v1366 = vunpack.c.l.b16 %v433
  %v1367 = vunpack.c.l.b16 %v434
  %v1368 = vunpack.c.l.b16 %v435
  %v1369 = vunpack.c.l.b16 %v436
  %v1370 = vunpack.c.l.b16 %v437
  %v1371 = vunpack.c.l.b16 %v438
  %v1372 = vunpack.c.l.b16 %v439
  %v1373 = vunpack.c.l.b16 %v440
  %v1374 = vpack.c.b16 %v975, %v974
  %v1375 = vpack.c.b16 %v977, %v976
  %v1376 = vpack.c.b16 %v979, %v978
  %v1377 = vpack.c.b16 %v981, %v980
  %v1378 = vpack.c.b16 %v983, %v982
  %v1379 = vpack.c.b16 %v985, %v984
  %v1380 = vpack.c.b16 %v987, %v986
  %v1381 = vpack.c.b16 %v989, %v988
  %v1382 = vpack.c.b16 %v991, %v990
  %v1383 = vpack.c.b16 %v993, %v992
  %v1384 = vpack.c.b16 %v995, %v994
  %v1385 = vpack.c.b16 %v997, %v996
  %v1386 = vpack.c.b16 %v999, %v998
  %v1387 = vpack.c.b16 %v1001, %v1000
  %v1388 = vpack.c.b16 %v1003, %v1002
  %v1389 = vpack.c.b16 %v1005, %v1004
  %v1390 = vpack.c.b16 %v1007, %v1006
  %v1391 = vpack.c.b16 %v1009, %v1008
  %v1392 = vpack.c.b16 %v1011, %v1010
  %v1393 = vpack.c.b16 %v1013, %v1012
  %v1394 = vpack.c.b16 %v1015, %v1014
  %v1395 = vpack.c.b16 %v1017, %v1016
  %v1396 = vpack.c.b16 %v1019, %v1018
  %v1397 = vpack.c.b16 %v1021, %v1020
  %v1398 = vpack.c.b16 %v1023, %v1022
  %v1399 = vpack.c.b16 %v1025, %v1024
  %v1400 = vpack.c.b16 %v1027, %v1026
  %v1401 = vpack.c.b16 %v1029, %v1028
  %v1402 = vpack.c.b16 %v1031, %v1030
  %v1403 = vpack.c.b16 %v1033, %v1032
  %v1404 = vpack.c.b16 %v1035, %v1034
  %v1405 = vpack.c.b16 %v1037, %v1036
  %v1406 = vpack.c.b16 %v1039, %v1038
  %v1407 = vpack.c.b16 %v1041, %v1040
  %v1408 = vpack.c.b16 %v1043, %v1042
  %v1409 = vpack.c.b16 %v1045, %v1044
  %v1410 = vpack.c.b16 %v1047, %v1046
  %v1411 = vpack.c.b16 %v1049, %v1048
  %v1412 = vpack.c.b16 %v1051, %v1050
  %v1413 = vpack.c.b16 %v1053, %v1052
  %v1414 = vpack.c.b16 %v1055, %v1054
  %v1415 = vpack.c.b16 %v1057, %v1056
  %v1416 = vpack.c.b16 %v1059, %v1058
  %v1417 = vpack.c.b16 %v1061, %v1060
  %v1418 = vpack.c.b16 %v1063, %v1062
  %v1419 = vpack.c.b16 %v1065, %v1064
  %v1420 = vpack.c.b16 %v1067, %v1066
  %v1421 = vpack.c.b16 %v1069, %v1068
  %v1422 = vpack.c.b16 %v1071, %v1070
  %v1423 = vpack.c.b16 %v1073, %v1072
  %v1424 = vpack.c.b16 %v1075, %v1074
  %v1425 = vpack.c.b16 %v1077, %v1076
  %v1426 = vpack.c.b16 %v1079, %v1078
  %v1427 = vpack.c.b16 %v1081, %v1080
  %v1428 = vpack.c.b16 %v1083, %v1082
  %v1429 = vpack.c.b16 %v1085, %v1084
  %v1430 = vpack.c.b16 %v1087, %v1086
  %v1431 = vpack.c.b16 %v1089, %v1088
  %v1432 = vpack.c.b16 %v1091, %v1090
  %v1433 = vpack.c.b16 %v1093, %v1092
  %v1434 = vpack.c.b16 %v1095, %v1094
  %v1435 = vpack.c.b16 %v1097, %v1096
  %v1436 = vpack.c.b16 %v1099, %v1098
  %v1437 = vpack.c.b16 %v1101, %v1100
  %v1438 = vpack.c.b16 %v1103, %v1102
  %v1439 = vpack.c.b16 %v1105, %v1104
  %v1440 = vpack.c.b16 %v1107, %v1106
  %v1441 = vpack.c.b16 %v1109, %v1108
  %v1442 = vpack.c.b16 %v1111, %v1110
  %v1443 = vpack.c.b16 %v1113, %v1112
  %v1444 = vpack.c.b16 %v1115, %v1114
  %v1445 = vpack.c.b16 %v1117, %v1116
  %v1446 = vpack.c.b16 %v1119, %v1118
  %v1447 = vpack.c.b16 %v1121, %v1120
  %v1448 = vpack.c.b16 %v1123, %v1122
  %v1449 = vpack.c.b16 %v1125, %v1124
  %v1450 = vpack.c.b16 %v1127, %v1126
  %v1451 = vpack.c.b16 %v1129, %v1128
  %v1452 = vpack.c.b16 %v1131, %v1130
  %v1453 = vpack.c.b16 %v1133, %v1132
  %v1454 = vpack.c.b16 %v1135, %v1134
  %v1455 = vpack.c.b16 %v1137, %v1136
  %v1456 = vpack.c.b16 %v1139, %v1138
  %v1457 = vpack.c.b16 %v1141, %v1140
  %v1458 = vpack.c.b16 %v1143, %v1142
  %v1459 = vpack.c.b16 %v1145, %v1144
  %v1460 = vpack.c.b16 %v1147, %v1146
  %v1461 = vpack.c.b16 %v1149, %v1148
  %v1462 = vpack.c.b16 %v1151, %v1150
  %v1463 = vpack.c.b16 %v1153, %v1152
  %v1464 = vpack.c.b16 %v1155, %v1154
  %v1465 = vpack.c.b16 %v1157, %v1156
  %v1466 = vpack.c.b16 %v1159, %v1158
  %v1467 = vpack.c.b16 %v1161, %v1160
  %v1468 = vpack.c.b16 %v1163, %v1162
  %v1469 = vpack.c.b16 %v1165, %v1164
  %v1470 = vpack.c.b16 %v1167, %v1166
  %v1471 = vpack.c.b16 %v1169, %v1168
  %v1472 = vpack.c.b16 %v1171, %v1170
  %v1473 = vpack.c.b16 %v1173, %v1172
  %v1474 = vpack.c.b16 %v1175, %v1174
  %v1475 = vpack.c.b16 %v1177, %v1176
  %v1476 = vpack.c.b16 %v1179, %v1178
  %v1477 = vpack.c.b16 %v1181, %v1180
  %v1478 = vpack.c.b16 %v1183, %v1182
  %v1479 = vpack.c.b16 %v1185, %v1184
  %v1480 = vpack.c.b16 %v1187, %v1186
  %v1481 = vpack.c.b16 %v1189, %v1188
  %v1482 = vpack.c.b16 %v1191, %v1190
  %v1483 = vpack.c.b16 %v1193, %v1192
  %v1484 = vpack.c.b16 %v1195, %v1194
  %v1485 = vpack.c.b16 %v1197, %v1196
  %v1486 = vpack.c.b16 %v1199, %v1198
  %v1487 = vpack.c.b16 %v1201, %v1200
  %v1488 = vpack.c.b16 %v1203, %v1202
  %v1489 = vpack.c.b16 %v1205, %v1204
  %v1490 = vpack.c.b16 %v1207, %v1206
  %v1491 = vpack.c.b16 %v1209, %v1208
  %v1492 = vpack.c.b16 %v1211, %v1210
  %v1493 = vpack.c.b16 %v1213, %v1212
  %v1494 = vpack.c.b16 %v1215, %v1214
  %v1495 = vpack.c.b16 %v1217, %v1216
  %v1496 = vpack.c.b16 %v1219, %v1218
  %v1497 = vpack.c.b16 %v1221, %v1220
  %v1498 = vpack.c.b16 %v1223, %v1222
  %v1499 = vpack.c.b16 %v1225, %v1224
  %v1500 = vpack.c.b16 %v1227, %v1226
  %v1501 = vpack.c.b16 %v1229, %v1228
  %v1502 = vpack.c.b16 %v1231, %v1230
  %v1503 = vpack.c.b16 %v1233, %v1232
  %v1504 = vpack.c.b16 %v1235, %v1234
  %v1505 = vpack.c.b16 %v1237, %v1236
  %v1506 = vpack.c.b16 %v1239, %v1238
  %v1507 = vpack.c.b16 %v1241, %v1240
  %v1508 = vpack.c.b16 %v1243, %v1242
  %v1509 = vpack.c.b16 %v1245, %v1244
  %v1510 = vpack.c.b16 %v1247, %v1246
  %v1511 = vpack.c.b16 %v1249, %v1248
  %v1512 = vpack.c.b16 %v1251, %v1250
  %v1513 = vpack.c.b16 %v1253, %v1252
  %v1514 = vpack.c.b16 %v1255, %v1254
  %v1515 = vpack.c.b16 %v1257, %v1256
  %v1516 = vpack.c.b16 %v1259, %v1258
  %v1517 = vpack.c.b16 %v1261, %v1260
  %v1518 = vpack.c.b16 %v1263, %v1262
  %v1519 = vpack.c.b16 %v1265, %v1264
  %v1520 = vpack.c.b16 %v1267, %v1266
  %v1521 = vpack.c.b16 %v1269, %v1268
  %v1522 = vpack.c.b16 %v1271, %v1270
  %v1523 = vpack.c.b16 %v1273, %v1272
  %v1524 = vpack.c.b16 %v1275, %v1274
  %v1525 = vpack.c.b16 %v1277, %v1276
  %v1526 = vpack.c.b16 %v1279, %v1278
  %v1527 = vpack.c.b16 %v1281, %v1280
  %v1528 = vpack.c.b16 %v1283, %v1282
  %v1529 = vpack.c.b16 %v1285, %v1284
  %v1530 = vpack.c.b16 %v1287, %v1286
  %v1531 = vpack.c.b16 %v1289, %v1288
  %v1532 = vpack.c.b16 %v1291, %v1290
  %v1533 = vpack.c.b16 %v1293, %v1292
  %v1534 = vpack.c.b16 %v1295, %v1294
  %v1535 = vpack.c.b16 %v1297, %v1296
  %v1536 = vpack.c.b16 %v1299, %v1298
  %v1537 = vpack.c.b16 %v1301, %v1300
  %v1538 = vpack.c.b16 %v1303, %v1302
  %v1539 = vpack.c.b16 %v1305, %v1304
  %v1540 = vpack.c.b16 %v1307, %v1306
  %v1541 = vpack.c.b16 %v1309, %v1308
  %v1542 = vpack.c.b16 %v1311, %v1310
  %v1543 = vpack.c.b16 %v1313, %v1312
  %v1544 = vpack.c.b16 %v1315, %v1314
  %v1545 = vpack.c.b16 %v1317, %v1316
  %v1546 = vpack.c.b16 %v1319, %v1318
  %v1547 = vpack.c.b16 %v1321, %v1320
  %v1548 = vpack.c.b16 %v1323, %v1322
  %v1549 = vpack.c.b16 %v1325, %v1324
  %v1550 = vpack.c.b16 %v1327, %v1326
  %v1551 = vpack.c.b16 %v1329, %v1328
  %v1552 = vpack.c.b16 %v1331, %v1330
  %v1553 = vpack.c.b16 %v1333, %v1332
  %v1554 = vpack.c.b16 %v1335, %v1334
  %v1555 = vpack.c.b16 %v1337, %v1336
  %v1556 = vpack.c.b16 %v1339, %v1338
  %v1557 = vpack.c.b16 %v1341, %v1340
  %v1558 = vpack.c.b16 %v1343, %v1342
  %v1559 = vpack.c.b16 %v1345, %v1344
  %v1560 = vpack.c.b16 %v1347, %v1346
  %v1561 = vpack.c.b16 %v1349, %v1348
  %v1562 = vpack.c.b16 %v1351, %v1350
  %v1563 = vpack.c.b16 %v1353, %v1352
  %v1564 = vpack.c.b16 %v1355, %v1354
  %v1565 = vpack.c.b16 %v1357, %v1356
  %v1566 = vpack.c.b16 %v1359, %v1358
  %v1567 = vpack.c.b16 %v1361, %v1360
  %v1568 = vpack.c.b16 %v1363, %v1362
  %v1569 = vpack.c.b16 %v1365, %v1364
  %v1570 = vpack.c.b16 %v1367, %v1366
  %v1571 = vpack.c.b16 %v1369, %v1368
  %v1572 = vpack.c.b16 %v1371, %v1370
  %v1573 = vpack.c.b16 %v1373, %v1372
  %1774 = vmatprep.subr.bf16.mxu0 0
  %1775 = vmatpush1.bf16.msra.mxu0 %v1374
  %1776 = vmatprep.subr.bf16.mxu0 0
  %1777 = vmatpush1.bf16.msra.mxu0 %v1375
  %1778 = vmatprep.subr.bf16.mxu0 0
  %1779 = vmatpush1.bf16.msra.mxu0 %v1376
  %1780 = vmatprep.subr.bf16.mxu0 0
  %1781 = vmatpush1.bf16.msra.mxu0 %v1377
  %1782 = vmatprep.subr.bf16.mxu0 0
  %1783 = vmatpush1.bf16.msra.mxu0 %v1378
  %1784 = vmatprep.subr.bf16.mxu0 0
  %1785 = vmatpush1.bf16.msra.mxu0 %v1379
  %1786 = vmatprep.subr.bf16.mxu0 0
  %1787 = vmatpush1.bf16.msra.mxu0 %v1380
  %1788 = vmatprep.subr.bf16.mxu0 0
  %1789 = vmatpush1.bf16.msra.mxu0 %v1381
  %1790 = vmatprep.subr.bf16.mxu0 0
  %1791 = vmatpush1.bf16.msra.mxu0 %v1382
  %1792 = vmatprep.subr.bf16.mxu0 0
  %1793 = vmatpush1.bf16.msra.mxu0 %v1383
  %1794 = vmatprep.subr.bf16.mxu0 0
  %1795 = vmatpush1.bf16.msra.mxu0 %v1384
  %1796 = vmatprep.subr.bf16.mxu0 0
  %1797 = vmatpush1.bf16.msra.mxu0 %v1385
  %1798 = vmatprep.subr.bf16.mxu0 0
  %1799 = vmatpush1.bf16.msra.mxu0 %v1386
  %1800 = vmatprep.subr.bf16.mxu0 0
  %1801 = vmatpush1.bf16.msra.mxu0 %v1387
  %1802 = vmatprep.subr.bf16.mxu0 0
  %1803 = vmatpush1.bf16.msra.mxu0 %v1388
  %1804 = vmatprep.subr.bf16.mxu0 0
  %1805 = vmatpush1.bf16.msra.mxu0 %v1389
  %1806 = vmatprep.mubr.bf16.mxu0 %v525
  %1807 = vmatmul.mubr.bf16.gmra.mrb[0].mxu0 %v524
  %v1808 = vpop.f32.mrb[0].mxu0
  %v1809 = vadd.f32 %v446, %v1808
  %v1810 = vpop.f32.mrb[0].mxu0
  %v1811 = vpop.f32.mrb[0].mxu0
  %v1812 = vadd.f32 %v446, %v1811
  %v1813 = vpop.f32.mrb[0].mxu0
  %1814 = vdwg.mxu0
  %1815 = vmatprep.subr.bf16.mxu0 0
  %1816 = vmatpush1.bf16.msra.mxu0 %v1390
  %1817 = vmatprep.subr.bf16.mxu0 0
  %1818 = vmatpush1.bf16.msra.mxu0 %v1391
  %1819 = vmatprep.subr.bf16.mxu0 0
  %1820 = vmatpush1.bf16.msra.mxu0 %v1392
  %1821 = vmatprep.subr.bf16.mxu0 0
  %1822 = vmatpush1.bf16.msra.mxu0 %v1393
  %1823 = vmatprep.subr.bf16.mxu0 0
  %1824 = vmatpush1.bf16.msra.mxu0 %v1394
  %1825 = vmatprep.subr.bf16.mxu0 0
  %1826 = vmatpush1.bf16.msra.mxu0 %v1395
  %1827 = vmatprep.subr.bf16.mxu0 0
  %1828 = vmatpush1.bf16.msra.mxu0 %v1396
  %1829 = vmatprep.subr.bf16.mxu0 0
  %1830 = vmatpush1.bf16.msra.mxu0 %v1397
  %1831 = vmatprep.subr.bf16.mxu0 0
  %1832 = vmatpush1.bf16.msra.mxu0 %v1398
  %1833 = vmatprep.subr.bf16.mxu0 0
  %1834 = vmatpush1.bf16.msra.mxu0 %v1399
  %1835 = vmatprep.subr.bf16.mxu0 0
  %1836 = vmatpush1.bf16.msra.mxu0 %v1400
  %1837 = vmatprep.subr.bf16.mxu0 0
  %1838 = vmatpush1.bf16.msra.mxu0 %v1401
  %1839 = vmatprep.subr.bf16.mxu0 0
  %1840 = vmatpush1.bf16.msra.mxu0 %v1402
  %1841 = vmatprep.subr.bf16.mxu0 0
  %1842 = vmatpush1.bf16.msra.mxu0 %v1403
  %1843 = vmatprep.subr.bf16.mxu0 0
  %1844 = vmatpush1.bf16.msra.mxu0 %v1404
  %1845 = vmatprep.subr.bf16.mxu0 0
  %1846 = vmatpush1.bf16.msra.mxu0 %v1405
  %1847 = vmatprep.mubr.bf16.mxu0 %v527
  %1848 = vmatmul.mubr.bf16.gmra.mrb[0].mxu0 %v526
  %v1849 = vpop.f32.mrb[0].mxu0
  %v1850 = vadd.f32 %v1809, %v1849
  %v1851 = vpop.f32.mrb[0].mxu0
  %v1852 = vpop.f32.mrb[0].mxu0
  %v1853 = vadd.f32 %v1812, %v1852
  %v1854 = vpop.f32.mrb[0].mxu0
  %1855 = vdwg.mxu0
  %1856 = vmatprep.subr.bf16.mxu0 0
  %1857 = vmatpush1.bf16.msra.mxu0 %v1406
  %1858 = vmatprep.subr.bf16.mxu0 0
  %1859 = vmatpush1.bf16.msra.mxu0 %v1407
  %1860 = vmatprep.subr.bf16.mxu0 0
  %1861 = vmatpush1.bf16.msra.mxu0 %v1408
  %1862 = vmatprep.subr.bf16.mxu0 0
  %1863 = vmatpush1.bf16.msra.mxu0 %v1409
  %1864 = vmatprep.subr.bf16.mxu0 0
  %1865 = vmatpush1.bf16.msra.mxu0 %v1410
  %1866 = vmatprep.subr.bf16.mxu0 0
  %1867 = vmatpush1.bf16.msra.mxu0 %v1411
  %1868 = vmatprep.subr.bf16.mxu0 0
  %1869 = vmatpush1.bf16.msra.mxu0 %v1412
  %1870 = vmatprep.subr.bf16.mxu0 0
  %1871 = vmatpush1.bf16.msra.mxu0 %v1413
  %1872 = vmatprep.subr.bf16.mxu0 0
  %1873 = vmatpush1.bf16.msra.mxu0 %v1414
  %1874 = vmatprep.subr.bf16.mxu0 0
  %1875 = vmatpush1.bf16.msra.mxu0 %v1415
  %1876 = vmatprep.subr.bf16.mxu0 0
  %1877 = vmatpush1.bf16.msra.mxu0 %v1416
  %1878 = vmatprep.subr.bf16.mxu0 0
  %1879 = vmatpush1.bf16.msra.mxu0 %v1417
  %1880 = vmatprep.subr.bf16.mxu0 0
  %1881 = vmatpush1.bf16.msra.mxu0 %v1418
  %1882 = vmatprep.subr.bf16.mxu0 0
  %1883 = vmatpush1.bf16.msra.mxu0 %v1419
  %1884 = vmatprep.subr.bf16.mxu0 0
  %1885 = vmatpush1.bf16.msra.mxu0 %v1420
  %1886 = vmatprep.subr.bf16.mxu0 0
  %1887 = vmatpush1.bf16.msra.mxu0 %v1421
  %1888 = vmatprep.mubr.bf16.mxu0 %v529
  %1889 = vmatmul.mubr.bf16.gmra.mrb[0].mxu0 %v528
  %v1890 = vpop.f32.mrb[0].mxu0
  %v1891 = vadd.f32 %v1850, %v1890
  %v1892 = vpop.f32.mrb[0].mxu0
  %v1893 = vpop.f32.mrb[0].mxu0
  %v1894 = vadd.f32 %v1853, %v1893
  %v1895 = vpop.f32.mrb[0].mxu0
  %1896 = vdwg.mxu0
  %1897 = vmatprep.subr.bf16.mxu0 0
  %1898 = vmatpush1.bf16.msra.mxu0 %v1422
  %1899 = vmatprep.subr.bf16.mxu0 0
  %1900 = vmatpush1.bf16.msra.mxu0 %v1423
  %1901 = vmatprep.subr.bf16.mxu0 0
  %1902 = vmatpush1.bf16.msra.mxu0 %v1424
  %1903 = vmatprep.subr.bf16.mxu0 0
  %1904 = vmatpush1.bf16.msra.mxu0 %v1425
  %1905 = vmatprep.subr.bf16.mxu0 0
  %1906 = vmatpush1.bf16.msra.mxu0 %v1426
  %1907 = vmatprep.subr.bf16.mxu0 0
  %1908 = vmatpush1.bf16.msra.mxu0 %v1427
  %1909 = vmatprep.subr.bf16.mxu0 0
  %1910 = vmatpush1.bf16.msra.mxu0 %v1428
  %1911 = vmatprep.subr.bf16.mxu0 0
  %1912 = vmatpush1.bf16.msra.mxu0 %v1429
  %1913 = vmatprep.subr.bf16.mxu0 0
  %1914 = vmatpush1.bf16.msra.mxu0 %v1430
  %1915 = vmatprep.subr.bf16.mxu0 0
  %1916 = vmatpush1.bf16.msra.mxu0 %v1431
  %1917 = vmatprep.subr.bf16.mxu0 0
  %1918 = vmatpush1.bf16.msra.mxu0 %v1432
  %1919 = vmatprep.subr.bf16.mxu0 0
  %1920 = vmatpush1.bf16.msra.mxu0 %v1433
  %1921 = vmatprep.subr.bf16.mxu0 0
  %1922 = vmatpush1.bf16.msra.mxu0 %v1434
  %1923 = vmatprep.subr.bf16.mxu0 0
  %1924 = vmatpush1.bf16.msra.mxu0 %v1435
  %1925 = vmatprep.subr.bf16.mxu0 0
  %1926 = vmatpush1.bf16.msra.mxu0 %v1436
  %1927 = vmatprep.subr.bf16.mxu0 0
  %1928 = vmatpush1.bf16.msra.mxu0 %v1437
  %1929 = vmatprep.mubr.bf16.mxu0 %v531
  %1930 = vmatmul.mubr.bf16.gmra.mrb[0].mxu0 %v530
  %v1931 = vpop.f32.mrb[0].mxu0
  %v1932 = vadd.f32 %v1891, %v1931
  %v1933 = vpop.f32.mrb[0].mxu0
  %v1934 = vpop.f32.mrb[0].mxu0
  %v1935 = vadd.f32 %v1894, %v1934
  %v1936 = vpop.f32.mrb[0].mxu0
  %1937 = vdwg.mxu0
  %1938 = vmatprep.subr.bf16.mxu0 0
  %1939 = vmatpush1.bf16.msra.mxu0 %v1438
  %1940 = vmatprep.subr.bf16.mxu0 0
  %1941 = vmatpush1.bf16.msra.mxu0 %v1439
  %1942 = vmatprep.subr.bf16.mxu0 0
  %1943 = vmatpush1.bf16.msra.mxu0 %v1440
  %1944 = vmatprep.subr.bf16.mxu0 0
  %1945 = vmatpush1.bf16.msra.mxu0 %v1441
  %1946 = vmatprep.subr.bf16.mxu0 0
  %1947 = vmatpush1.bf16.msra.mxu0 %v1442
  %1948 = vmatprep.subr.bf16.mxu0 0
  %1949 = vmatpush1.bf16.msra.mxu0 %v1443
  %1950 = vmatprep.subr.bf16.mxu0 0
  %1951 = vmatpush1.bf16.msra.mxu0 %v1444
  %1952 = vmatprep.subr.bf16.mxu0 0
  %1953 = vmatpush1.bf16.msra.mxu0 %v1445
  %1954 = vmatprep.subr.bf16.mxu0 0
  %1955 = vmatpush1.bf16.msra.mxu0 %v1446
  %1956 = vmatprep.subr.bf16.mxu0 0
  %1957 = vmatpush1.bf16.msra.mxu0 %v1447
  %1958 = vmatprep.subr.bf16.mxu0 0
  %1959 = vmatpush1.bf16.msra.mxu0 %v1448
  %1960 = vmatprep.subr.bf16.mxu0 0
  %1961 = vmatpush1.bf16.msra.mxu0 %v1449
  %1962 = vmatprep.subr.bf16.mxu0 0
  %1963 = vmatpush1.bf16.msra.mxu0 %v1450
  %1964 = vmatprep.subr.bf16.mxu0 0
  %1965 = vmatpush1.bf16.msra.mxu0 %v1451
  %1966 = vmatprep.subr.bf16.mxu0 0
  %1967 = vmatpush1.bf16.msra.mxu0 %v1452
  %1968 = vmatprep.subr.bf16.mxu0 0
  %1969 = vmatpush1.bf16.msra.mxu0 %v1453
  %1970 = vmatprep.mubr.bf16.mxu0 %v533
  %1971 = vmatmul.mubr.bf16.gmra.mrb[0].mxu0 %v532
  %v1972 = vpop.f32.mrb[0].mxu0
  %v1973 = vadd.f32 %v1932, %v1972
  %v1974 = vpop.f32.mrb[0].mxu0
  %v1975 = vpop.f32.mrb[0].mxu0
  %v1976 = vadd.f32 %v1935, %v1975
  %v1977 = vpop.f32.mrb[0].mxu0
  %1978 = vdwg.mxu0
  %1979 = vmatprep.subr.bf16.mxu0 0
  %1980 = vmatpush1.bf16.msra.mxu0 %v1454
  %1981 = vmatprep.subr.bf16.mxu0 0
  %1982 = vmatpush1.bf16.msra.mxu0 %v1455
  %1983 = vmatprep.subr.bf16.mxu0 0
  %1984 = vmatpush1.bf16.msra.mxu0 %v1456
  %1985 = vmatprep.subr.bf16.mxu0 0
  %1986 = vmatpush1.bf16.msra.mxu0 %v1457
  %1987 = vmatprep.subr.bf16.mxu0 0
  %1988 = vmatpush1.bf16.msra.mxu0 %v1458
  %1989 = vmatprep.subr.bf16.mxu0 0
  %1990 = vmatpush1.bf16.msra.mxu0 %v1459
  %1991 = vmatprep.subr.bf16.mxu0 0
  %1992 = vmatpush1.bf16.msra.mxu0 %v1460
  %1993 = vmatprep.subr.bf16.mxu0 0
  %1994 = vmatpush1.bf16.msra.mxu0 %v1461
  %1995 = vmatprep.subr.bf16.mxu0 0
  %1996 = vmatpush1.bf16.msra.mxu0 %v1462
  %1997 = vmatprep.subr.bf16.mxu0 0
  %1998 = vmatpush1.bf16.msra.mxu0 %v1463
  %1999 = vmatprep.subr.bf16.mxu0 0
  %2000 = vmatpush1.bf16.msra.mxu0 %v1464
  %2001 = vmatprep.subr.bf16.mxu0 0
  %2002 = vmatpush1.bf16.msra.mxu0 %v1465
  %2003 = vmatprep.subr.bf16.mxu0 0
  %2004 = vmatpush1.bf16.msra.mxu0 %v1466
  %2005 = vmatprep.subr.bf16.mxu0 0
  %2006 = vmatpush1.bf16.msra.mxu0 %v1467
  %2007 = vmatprep.subr.bf16.mxu0 0
  %2008 = vmatpush1.bf16.msra.mxu0 %v1468
  %2009 = vmatprep.subr.bf16.mxu0 0
  %2010 = vmatpush1.bf16.msra.mxu0 %v1469
  %2011 = vmatprep.mubr.bf16.mxu0 %v535
  %2012 = vmatmul.mubr.bf16.gmra.mrb[0].mxu0 %v534
  %v2013 = vpop.f32.mrb[0].mxu0
  %v2014 = vadd.f32 %v1973, %v2013
  %v2015 = vpop.f32.mrb[0].mxu0
  %v2016 = vpop.f32.mrb[0].mxu0
  %v2017 = vadd.f32 %v1976, %v2016
  %v2018 = vpop.f32.mrb[0].mxu0
  %2019 = vdwg.mxu0
  %2020 = vmatprep.subr.bf16.mxu0 0
  %2021 = vmatpush1.bf16.msra.mxu0 %v1470
  %2022 = vmatprep.subr.bf16.mxu0 0
  %2023 = vmatpush1.bf16.msra.mxu0 %v1471
  %2024 = vmatprep.subr.bf16.mxu0 0
  %2025 = vmatpush1.bf16.msra.mxu0 %v1472
  %2026 = vmatprep.subr.bf16.mxu0 0
  %2027 = vmatpush1.bf16.msra.mxu0 %v1473
  %2028 = vmatprep.subr.bf16.mxu0 0
  %2029 = vmatpush1.bf16.msra.mxu0 %v1474
  %2030 = vmatprep.subr.bf16.mxu0 0
  %2031 = vmatpush1.bf16.msra.mxu0 %v1475
  %2032 = vmatprep.subr.bf16.mxu0 0
  %2033 = vmatpush1.bf16.msra.mxu0 %v1476
  %2034 = vmatprep.subr.bf16.mxu0 0
  %2035 = vmatpush1.bf16.msra.mxu0 %v1477
  %2036 = vmatprep.subr.bf16.mxu0 0
  %2037 = vmatpush1.bf16.msra.mxu0 %v1478
  %2038 = vmatprep.subr.bf16.mxu0 0
  %2039 = vmatpush1.bf16.msra.mxu0 %v1479
  %2040 = vmatprep.subr.bf16.mxu0 0
  %2041 = vmatpush1.bf16.msra.mxu0 %v1480
  %2042 = vmatprep.subr.bf16.mxu0 0
  %2043 = vmatpush1.bf16.msra.mxu0 %v1481
  %2044 = vmatprep.subr.bf16.mxu0 0
  %2045 = vmatpush1.bf16.msra.mxu0 %v1482
  %2046 = vmatprep.subr.bf16.mxu0 0
  %2047 = vmatpush1.bf16.msra.mxu0 %v1483
  %2048 = vmatprep.subr.bf16.mxu0 0
  %2049 = vmatpush1.bf16.msra.mxu0 %v1484
  %2050 = vmatprep.subr.bf16.mxu0 0
  %2051 = vmatpush1.bf16.msra.mxu0 %v1485
  %2052 = vmatprep.mubr.bf16.mxu0 %v537
  %2053 = vmatmul.mubr.bf16.gmra.mrb[0].mxu0 %v536
  %v2054 = vpop.f32.mrb[0].mxu0
  %v2055 = vadd.f32 %v2014, %v2054
  %v2056 = vpop.f32.mrb[0].mxu0
  %v2057 = vpop.f32.mrb[0].mxu0
  %v2058 = vadd.f32 %v2017, %v2057
  %v2059 = vpop.f32.mrb[0].mxu0
  %2060 = vdwg.mxu0
  %2061 = vmatprep.subr.bf16.mxu0 0
  %2062 = vmatpush1.bf16.msra.mxu0 %v1486
  %2063 = vmatprep.subr.bf16.mxu0 0
  %2064 = vmatpush1.bf16.msra.mxu0 %v1487
  %2065 = vmatprep.subr.bf16.mxu0 0
  %2066 = vmatpush1.bf16.msra.mxu0 %v1488
  %2067 = vmatprep.subr.bf16.mxu0 0
  %2068 = vmatpush1.bf16.msra.mxu0 %v1489
  %2069 = vmatprep.subr.bf16.mxu0 0
  %2070 = vmatpush1.bf16.msra.mxu0 %v1490
  %2071 = vmatprep.subr.bf16.mxu0 0
  %2072 = vmatpush1.bf16.msra.mxu0 %v1491
  %2073 = vmatprep.subr.bf16.mxu0 0
  %2074 = vmatpush1.bf16.msra.mxu0 %v1492
  %2075 = vmatprep.subr.bf16.mxu0 0
  %2076 = vmatpush1.bf16.msra.mxu0 %v1493
  %2077 = vmatprep.subr.bf16.mxu0 0
  %2078 = vmatpush1.bf16.msra.mxu0 %v1494
  %2079 = vmatprep.subr.bf16.mxu0 0
  %2080 = vmatpush1.bf16.msra.mxu0 %v1495
  %2081 = vmatprep.subr.bf16.mxu0 0
  %2082 = vmatpush1.bf16.msra.mxu0 %v1496
  %2083 = vmatprep.subr.bf16.mxu0 0
  %2084 = vmatpush1.bf16.msra.mxu0 %v1497
  %2085 = vmatprep.subr.bf16.mxu0 0
  %2086 = vmatpush1.bf16.msra.mxu0 %v1498
  %2087 = vmatprep.subr.bf16.mxu0 0
  %2088 = vmatpush1.bf16.msra.mxu0 %v1499
  %2089 = vmatprep.subr.bf16.mxu0 0
  %2090 = vmatpush1.bf16.msra.mxu0 %v1500
  %2091 = vmatprep.subr.bf16.mxu0 0
  %2092 = vmatpush1.bf16.msra.mxu0 %v1501
  %2093 = vmatprep.mubr.bf16.mxu0 %v539
  %2094 = vmatmul.mubr.bf16.gmra.mrb[0].mxu0 %v538
  %v2095 = vpop.f32.mrb[0].mxu0
  %v2096 = vadd.f32 %v2055, %v2095
  %v2097 = vpop.f32.mrb[0].mxu0
  %v2098 = vpop.f32.mrb[0].mxu0
  %v2099 = vadd.f32 %v2058, %v2098
  %v2100 = vpop.f32.mrb[0].mxu0
  %2101 = vdwg.mxu0
  %2102 = vmatprep.subr.bf16.mxu0 0
  %2103 = vmatpush1.bf16.msra.mxu0 %v1502
  %2104 = vmatprep.subr.bf16.mxu0 0
  %2105 = vmatpush1.bf16.msra.mxu0 %v1503
  %2106 = vmatprep.subr.bf16.mxu0 0
  %2107 = vmatpush1.bf16.msra.mxu0 %v1504
  %2108 = vmatprep.subr.bf16.mxu0 0
  %2109 = vmatpush1.bf16.msra.mxu0 %v1505
  %2110 = vmatprep.subr.bf16.mxu0 0
  %2111 = vmatpush1.bf16.msra.mxu0 %v1506
  %2112 = vmatprep.subr.bf16.mxu0 0
  %2113 = vmatpush1.bf16.msra.mxu0 %v1507
  %2114 = vmatprep.subr.bf16.mxu0 0
  %2115 = vmatpush1.bf16.msra.mxu0 %v1508
  %2116 = vmatprep.subr.bf16.mxu0 0
  %2117 = vmatpush1.bf16.msra.mxu0 %v1509
  %2118 = vmatprep.subr.bf16.mxu0 0
  %2119 = vmatpush1.bf16.msra.mxu0 %v1510
  %2120 = vmatprep.subr.bf16.mxu0 0
  %2121 = vmatpush1.bf16.msra.mxu0 %v1511
  %2122 = vmatprep.subr.bf16.mxu0 0
  %2123 = vmatpush1.bf16.msra.mxu0 %v1512
  %2124 = vmatprep.subr.bf16.mxu0 0
  %2125 = vmatpush1.bf16.msra.mxu0 %v1513
  %2126 = vmatprep.subr.bf16.mxu0 0
  %2127 = vmatpush1.bf16.msra.mxu0 %v1514
  %2128 = vmatprep.subr.bf16.mxu0 0
  %2129 = vmatpush1.bf16.msra.mxu0 %v1515
  %2130 = vmatprep.subr.bf16.mxu0 0
  %2131 = vmatpush1.bf16.msra.mxu0 %v1516
  %2132 = vmatprep.subr.bf16.mxu0 0
  %2133 = vmatpush1.bf16.msra.mxu0 %v1517
  %2134 = vmatprep.mubr.bf16.mxu0 %v541
  %2135 = vmatmul.mubr.bf16.gmra.mrb[0].mxu0 %v540
  %v2136 = vpop.f32.mrb[0].mxu0
  %v2137 = vadd.f32 %v2096, %v2136
  %v2138 = vpop.f32.mrb[0].mxu0
  %v2139 = vpop.f32.mrb[0].mxu0
  %v2140 = vadd.f32 %v2099, %v2139
  %v2141 = vpop.f32.mrb[0].mxu0
  %2142 = vdwg.mxu0
  %2143 = vmatprep.subr.bf16.mxu0 0
  %2144 = vmatpush1.bf16.msra.mxu0 %v1518
  %2145 = vmatprep.subr.bf16.mxu0 0
  %2146 = vmatpush1.bf16.msra.mxu0 %v1519
  %2147 = vmatprep.subr.bf16.mxu0 0
  %2148 = vmatpush1.bf16.msra.mxu0 %v1520
  %2149 = vmatprep.subr.bf16.mxu0 0
  %2150 = vmatpush1.bf16.msra.mxu0 %v1521
  %2151 = vmatprep.subr.bf16.mxu0 0
  %2152 = vmatpush1.bf16.msra.mxu0 %v1522
  %2153 = vmatprep.subr.bf16.mxu0 0
  %2154 = vmatpush1.bf16.msra.mxu0 %v1523
  %2155 = vmatprep.subr.bf16.mxu0 0
  %2156 = vmatpush1.bf16.msra.mxu0 %v1524
  %2157 = vmatprep.subr.bf16.mxu0 0
  %2158 = vmatpush1.bf16.msra.mxu0 %v1525
  %2159 = vmatprep.subr.bf16.mxu0 0
  %2160 = vmatpush1.bf16.msra.mxu0 %v1526
  %2161 = vmatprep.subr.bf16.mxu0 0
  %2162 = vmatpush1.bf16.msra.mxu0 %v1527
  %2163 = vmatprep.subr.bf16.mxu0 0
  %2164 = vmatpush1.bf16.msra.mxu0 %v1528
  %2165 = vmatprep.subr.bf16.mxu0 0
  %2166 = vmatpush1.bf16.msra.mxu0 %v1529
  %2167 = vmatprep.subr.bf16.mxu0 0
  %2168 = vmatpush1.bf16.msra.mxu0 %v1530
  %2169 = vmatprep.subr.bf16.mxu0 0
  %2170 = vmatpush1.bf16.msra.mxu0 %v1531
  %2171 = vmatprep.subr.bf16.mxu0 0
  %2172 = vmatpush1.bf16.msra.mxu0 %v1532
  %2173 = vmatprep.subr.bf16.mxu0 0
  %2174 = vmatpush1.bf16.msra.mxu0 %v1533
  %2175 = vmatprep.mubr.bf16.mxu0 %v543
  %2176 = vmatmul.mubr.bf16.gmra.mrb[0].mxu0 %v542
  %v2177 = vpop.f32.mrb[0].mxu0
  %v2178 = vadd.f32 %v2137, %v2177
  %v2179 = vpop.f32.mrb[0].mxu0
  %v2180 = vpop.f32.mrb[0].mxu0
  %v2181 = vadd.f32 %v2140, %v2180
  %v2182 = vpop.f32.mrb[0].mxu0
  %2183 = vdwg.mxu0
  %2184 = vmatprep.subr.bf16.mxu0 0
  %2185 = vmatpush1.bf16.msra.mxu0 %v1534
  %2186 = vmatprep.subr.bf16.mxu0 0
  %2187 = vmatpush1.bf16.msra.mxu0 %v1535
  %2188 = vmatprep.subr.bf16.mxu0 0
  %2189 = vmatpush1.bf16.msra.mxu0 %v1536
  %2190 = vmatprep.subr.bf16.mxu0 0
  %2191 = vmatpush1.bf16.msra.mxu0 %v1537
  %2192 = vmatprep.subr.bf16.mxu0 0
  %2193 = vmatpush1.bf16.msra.mxu0 %v1538
  %2194 = vmatprep.subr.bf16.mxu0 0
  %2195 = vmatpush1.bf16.msra.mxu0 %v1539
  %2196 = vmatprep.subr.bf16.mxu0 0
  %2197 = vmatpush1.bf16.msra.mxu0 %v1540
  %2198 = vmatprep.subr.bf16.mxu0 0
  %2199 = vmatpush1.bf16.msra.mxu0 %v1541
  %2200 = vmatprep.subr.bf16.mxu0 0
  %2201 = vmatpush1.bf16.msra.mxu0 %v1542
  %2202 = vmatprep.subr.bf16.mxu0 0
  %2203 = vmatpush1.bf16.msra.mxu0 %v1543
  %2204 = vmatprep.subr.bf16.mxu0 0
  %2205 = vmatpush1.bf16.msra.mxu0 %v1544
  %2206 = vmatprep.subr.bf16.mxu0 0
  %2207 = vmatpush1.bf16.msra.mxu0 %v1545
  %2208 = vmatprep.subr.bf16.mxu0 0
  %2209 = vmatpush1.bf16.msra.mxu0 %v1546
  %2210 = vmatprep.subr.bf16.mxu0 0
  %2211 = vmatpush1.bf16.msra.mxu0 %v1547
  %2212 = vmatprep.subr.bf16.mxu0 0
  %2213 = vmatpush1.bf16.msra.mxu0 %v1548
  %2214 = vmatprep.subr.bf16.mxu0 0
  %2215 = vmatpush1.bf16.msra.mxu0 %v1549
  %2216 = vmatprep.mubr.bf16.mxu0 %v545
  %2217 = vmatmul.mubr.bf16.gmra.mrb[0].mxu0 %v544
  %v2218 = vpop.f32.mrb[0].mxu0
  %v2219 = vadd.f32 %v2178, %v2218
  %v2220 = vpop.f32.mrb[0].mxu0
  %v2221 = vpop.f32.mrb[0].mxu0
  %v2222 = vadd.f32 %v2181, %v2221
  %v2223 = vpop.f32.mrb[0].mxu0
  %2224 = vdwg.mxu0
  %2225 = vmatprep.subr.bf16.mxu0 0
  %2226 = vmatpush1.bf16.msra.mxu0 %v1550
  %2227 = vmatprep.subr.bf16.mxu0 0
  %2228 = vmatpush1.bf16.msra.mxu0 %v1551
  %2229 = vmatprep.subr.bf16.mxu0 0
  %2230 = vmatpush1.bf16.msra.mxu0 %v1552
  %2231 = vmatprep.subr.bf16.mxu0 0
  %2232 = vmatpush1.bf16.msra.mxu0 %v1553
  %2233 = vmatprep.subr.bf16.mxu0 0
  %2234 = vmatpush1.bf16.msra.mxu0 %v1554
  %2235 = vmatprep.subr.bf16.mxu0 0
  %2236 = vmatpush1.bf16.msra.mxu0 %v1555
  %2237 = vmatprep.subr.bf16.mxu0 0
  %2238 = vmatpush1.bf16.msra.mxu0 %v1556
  %2239 = vmatprep.subr.bf16.mxu0 0
  %2240 = vmatpush1.bf16.msra.mxu0 %v1557
  %2241 = vmatprep.subr.bf16.mxu0 0
  %2242 = vmatpush1.bf16.msra.mxu0 %v1558
  %2243 = vmatprep.subr.bf16.mxu0 0
  %2244 = vmatpush1.bf16.msra.mxu0 %v1559
  %2245 = vmatprep.subr.bf16.mxu0 0
  %2246 = vmatpush1.bf16.msra.mxu0 %v1560
  %2247 = vmatprep.subr.bf16.mxu0 0
  %2248 = vmatpush1.bf16.msra.mxu0 %v1561
  %2249 = vmatprep.subr.bf16.mxu0 0
  %2250 = vmatpush1.bf16.msra.mxu0 %v1562
  %2251 = vmatprep.subr.bf16.mxu0 0
  %2252 = vmatpush1.bf16.msra.mxu0 %v1563
  %2253 = vmatprep.subr.bf16.mxu0 0
  %2254 = vmatpush1.bf16.msra.mxu0 %v1564
  %2255 = vmatprep.subr.bf16.mxu0 0
  %2256 = vmatpush1.bf16.msra.mxu0 %v1565
  %2257 = vmatprep.mubr.bf16.mxu0 %v547
  %2258 = vmatmul.mubr.bf16.gmra.mrb[0].mxu0 %v546
  %v2259 = vpop.f32.mrb[0].mxu0
  %v2260 = vadd.f32 %v2219, %v2259
  %v2261 = vpop.f32.mrb[0].mxu0
  %v2262 = vpop.f32.mrb[0].mxu0
  %v2263 = vadd.f32 %v2222, %v2262
  %v2264 = vpop.f32.mrb[0].mxu0
  %2265 = vdwg.mxu0
  %2266 = vmatprep.subr.bf16.mxu0 0
  %2267 = vmatpush1.bf16.msra.mxu0 %v1566
  %2268 = vmatprep.subr.bf16.mxu0 0
  %2269 = vmatpush1.bf16.msra.mxu0 %v1567
  %2270 = vmatprep.subr.bf16.mxu0 0
  %2271 = vmatpush1.bf16.msra.mxu0 %v1568
  %2272 = vmatprep.subr.bf16.mxu0 0
  %2273 = vmatpush1.bf16.msra.mxu0 %v1569
  %2274 = vmatprep.subr.bf16.mxu0 0
  %2275 = vmatpush1.bf16.msra.mxu0 %v1570
  %2276 = vmatprep.subr.bf16.mxu0 0
  %2277 = vmatpush1.bf16.msra.mxu0 %v1571
  %2278 = vmatprep.subr.bf16.mxu0 0
  %2279 = vmatpush1.bf16.msra.mxu0 %v1572
  %2280 = vmatprep.subr.bf16.mxu0 0
  %2281 = vmatpush1.bf16.msra.mxu0 %v1573
  %2282 = vmatprep.subr.bf16.mxu0 0
  %2283 = vmatpush1.bf16.msra.mxu0 0
  %2284 = vmatprep.subr.bf16.mxu0 0
  %2285 = vmatpush1.bf16.msra.mxu0 0
  %2286 = vmatprep.subr.bf16.mxu0 0
  %2287 = vmatpush1.bf16.msra.mxu0 0
  %2288 = vmatprep.subr.bf16.mxu0 0
  %2289 = vmatpush1.bf16.msra.mxu0 0
  %2290 = vmatprep.subr.bf16.mxu0 0
  %2291 = vmatpush1.bf16.msra.mxu0 0
  %2292 = vmatprep.subr.bf16.mxu0 0
  %2293 = vmatpush1.bf16.msra.mxu0 0
  %2294 = vmatprep.subr.bf16.mxu0 0
  %2295 = vmatpush1.bf16.msra.mxu0 0
  %2296 = vmatprep.subr.bf16.mxu0 0
  %2297 = vmatpush1.bf16.msra.mxu0 0
  %2298 = vmatprep.mubr.bf16.mxu0 0
  %2299 = vmatmul.mubr.bf16.gmra.mrb[0].mxu0 %v548
  %v2300 = vpop.f32.mrb[0].mxu0
  %v2301 = vadd.f32 %v2260, %v2300
  %v2302 = vpop.f32.mrb[0].mxu0
  %v2303 = vpop.f32.mrb[0].mxu0
  %v2304 = vadd.f32 %v2263, %v2303
  %v2305 = vpop.f32.mrb[0].mxu0
  %2306 = vdwg.mxu0
  %2307 = vst [vmem:[%s3] sm:$0xff] %v2301
  %2308 = vst [vmem:[%s3 + $0x8] sm:$0xff] %v2304
  // Predicated region
  $region14: #{inception_aux_forward.3} parent=0 // pred_check
    _
  $region15: #{inception_aux_forward.3} parent=0 // pred_check_branch
    %2310 = sbr.rel (0) target = $region17
  $region16: #{inception_aux_forward.3} parent=0 // pred_region
    _
  $region17: #{inception_aux_forward.3} parent=0 // pred_fallthru
    _
  // Predicated region
  $region18: #{inception_aux_forward.3} parent=0 // pred_check
    _
  $region19: #{inception_aux_forward.3} parent=0 // pred_check_branch
    %2312 = sbr.rel (0) target = $region21
  $region20: #{inception_aux_forward.3} parent=0 // pred_region
    _
  $region21: #{inception_aux_forward.3} parent=0 // pred_fallthru
    _

</llo_original>
